<compile_context>
chip_gen: v5e
topology: v5e:2x2
jax: 0.10.0
libtpu: 0.0.40
codegen_flags: <defaults>
</compile_context>

<pallas_src>
import functools

import jax
import jax.numpy as jnp
from jax.experimental import pallas as pl
from jax.experimental.pallas import tpu as pltpu


def _cross_attention_kernel(x_ref, k_ref, v_ref,
                            wq_ref, wk_ref, wv_ref, wp_ref, bp_ref,
                            *rest, num_heads, have_qkv_bias, approx_recip):
    if have_qkv_bias:
        bq_ref, bk_ref, bv_ref, o_ref, ctx_ref = rest
    else:
        o_ref, ctx_ref = rest

    bt, n, c = x_ref.shape
    nk = k_ref.shape[1]
    nv = v_ref.shape[1]
    head_dim = c // num_heads
    out_dim = wp_ref.shape[1]
    mm_dtype = wq_ref.dtype   # compute dtype (bf16 weights -> bf16 MXU fast path)

    # ---- QKV projections: one (BT*N, C) x (C, C) matmul each. K = C keeps the
    # MXU systolic depth full on all generations (review item 10). The softmax
    # scale is already folded into wq (and bq) by the wrapper.
    xf = x_ref[...].reshape(bt * n, c).astype(mm_dtype)
    kf = k_ref[...].reshape(bt * nk, c).astype(mm_dtype)
    vf = v_ref[...].reshape(bt * nv, c).astype(mm_dtype)

    q = jnp.dot(xf, wq_ref[...], preferred_element_type=jnp.float32)    # (BT*N,  C)
    kk = jnp.dot(kf, wk_ref[...], preferred_element_type=jnp.float32)   # (BT*Nk, C)
    vv = jnp.dot(vf, wv_ref[...], preferred_element_type=jnp.float32)   # (BT*Nv, C)
    if have_qkv_bias:
        q = q + bq_ref[...]
        kk = kk + bk_ref[...]
        vv = vv + bv_ref[...]

    # Cast ONCE (hoisted out of the head loop) so every per-head slice moves the
    # narrow compute dtype instead of f32.
    q3 = q.astype(mm_dtype).reshape(bt, n, c)
    k3 = kk.astype(mm_dtype).reshape(bt, nk, c)
    v3 = vv.astype(mm_dtype).reshape(bt, nv, c)

    # ---- Per-head attention. Each head's context is written into its lane slot
    # of a (BT*N, C) VMEM scratch; the output projection then runs once with
    # K = C (full MXU depth) instead of H accumulating K = head_dim matmuls with
    # an f32 read-modify-write of the accumulator per head.
    # TODO(synk): for production InternVL shapes add a query-tile grid axis and
    # an online-softmax kv loop so the (BT, N, Nk) score tensor no longer caps
    # the block size on v7x's 64 MiB VMEM.
    for h in range(num_heads):
        lo = h * head_dim
        hi = lo + head_dim
        qh = q3[:, :, lo:hi]                                    # (BT, N,  D)
        kh = k3[:, :, lo:hi]                                    # (BT, Nk, D)
        vh = v3[:, :, lo:hi]                                    # (BT, Nv, D)

        # Scores: contract the last dims directly (no kh transpose).
        s = jnp.einsum('bnd,bkd->bnk', qh, kh,
                       preferred_element_type=jnp.float32)      # (BT, N, Nk)
        s = s - jnp.max(s, axis=-1, keepdims=True)
        p = jnp.exp(s)
        denom = jnp.sum(p, axis=-1, keepdims=True)
        if approx_recip:
            p = p * pl.reciprocal(denom, approx=True)           # EUP slot, ~free
        else:
            p = p / denom
        # TODO(synk): attn_drop / proj_drop are identity in eval mode; not implemented.

        ctx = jnp.einsum('bnk,bkd->bnd', p.astype(mm_dtype), vh,
                         preferred_element_type=jnp.float32)    # (BT, N, D)
        ctx_ref[:, lo:hi] = ctx.reshape(bt * n, head_dim).astype(mm_dtype)

    # ---- Output projection: ONE (BT*N, C) x (C, out_dim) matmul + bias. ----
    out = jnp.dot(ctx_ref[...], wp_ref[...], preferred_element_type=jnp.float32)
    out = out + bp_ref[...]
    o_ref[...] = out.reshape(bt, n, out_dim).astype(o_ref.dtype)


def _tpu_vmem_capacity_bytes():
    """Physical VMEM per TensorCore; falls back to 128 MiB if the query fails."""
    try:
        info = pltpu.get_tpu_info()
        return int(getattr(info, "vmem_capacity_bytes", 128 << 20))
    except Exception:
        return 128 << 20


def cross_attention(x, k, v, params, *, num_heads, batch_block=None,
                    compute_dtype=None, approx_softmax_recip=True):
    """x: (B, N, C); k: (B, Nk, C); v: (B, Nv, C) with Nk == Nv.

    params use the PyTorch nn.Linear layout:
      wq/wk/wv: (C, C)        (out_features, in_features)
      wp:       (out_dim, C)
      bp:       (out_dim,)
      optional bq/bk/bv: (C,)   (module built with qkv_bias=True)

    compute_dtype: MXU operand dtype (default x.dtype). For v6e/v7x production
    shapes pass jnp.bfloat16 (or bf16 inputs); matmul accumulation and softmax
    statistics stay in f32 regardless.
    """
    B, N, C = x.shape
    Nk = k.shape[1]
    Nv = v.shape[1]
    assert Nk == Nv, "attn @ v requires N_k == N_v"
    assert C % num_heads == 0
    head_dim = C // num_heads
    scale = head_dim ** (-0.5)
    out_dtype = x.dtype
    dt = compute_dtype if compute_dtype is not None else x.dtype
    # TODO(synk): k/v are coerced to the same compute dtype as x inside the kernel.

    # Pre-transpose weights to (in, out); fold the softmax scale into Wq (slight
    # rounding difference vs. post-matmul scaling if dt is low precision).
    wq = (params["wq"].T * scale).astype(dt)                  # (C, C), scale folded
    wk = params["wk"].T.astype(dt)                            # (C, C)
    wv = params["wv"].T.astype(dt)                            # (C, C)
    wp = params["wp"].T.astype(dt)                            # (C, out_dim), flat
    out_dim = wp.shape[1]
    bp = params["bp"].reshape(1, out_dim).astype(jnp.float32)

    have_qkv_bias = "bq" in params
    bias_args = []
    if have_qkv_bias:
        bias_args = [
            (params["bq"] * scale).reshape(1, C).astype(jnp.float32),  # scale folded
            params["bk"].reshape(1, C).astype(jnp.float32),
            params["bv"].reshape(1, C).astype(jnp.float32),
        ]

    # ---- VMEM-byte based block sizing (review items 5/6). ----
    act_isz = jnp.dtype(x.dtype).itemsize
    w_isz = jnp.dtype(dt).itemsize

    def vmem_estimate(bb):
        m = bb * N
        toks = bb * (N + Nk + Nv) * C
        io = 2 * act_isz * (toks + m * out_dim)                 # double-buffered blocks
        wconst = w_isz * (3 * C * C + C * out_dim) + 4 * (out_dim + 3 * C)
        scratch = w_isz * m * C                                 # ctx scratch
        tmp = (4 + w_isz) * toks                                # f32 q/kk/vv + casts
        tmp += 8 * bb * N * Nk                                  # scores + exp (f32)
        tmp += 4 * m * out_dim                                  # f32 projection out
        return io + wconst + scratch + tmp

    cap = _tpu_vmem_capacity_bytes()
    # Small-VMEM parts (v7x, 64 MiB) have two TensorCores: keep >= 2 grid steps
    # so the parallel batch axis can be sharded across them. Big-VMEM single-TC
    # parts (v5e/v6e) may collapse the grid to one maximal block.
    min_steps = 2 if cap <= (80 << 20) else 1
    budget = int(cap * 0.55)

    if batch_block is None:
        batch_block = 1
        for bb in range(1, B + 1):
            if B % bb:
                continue
            if B >= min_steps and (B // bb) < min_steps:
                continue
            if vmem_estimate(bb) <= budget:
                batch_block = bb
    assert B % batch_block == 0, "batch_block must divide B"
    grid = (B // batch_block,)

    vmem_limit = int(max(32 << 20,
                         min(2 * vmem_estimate(batch_block), int(cap * 0.75))))

    kernel = functools.partial(_cross_attention_kernel,
                               num_heads=num_heads,
                               have_qkv_bias=have_qkv_bias,
                               approx_recip=approx_softmax_recip)

    def const_spec(shape, pipeline_mode):
        idx = lambda b, _n=len(shape): (0,) * _n
        if pipeline_mode is None:
            return pl.BlockSpec(shape, idx)
        return pl.BlockSpec(shape, idx, pipeline_mode=pipeline_mode)

    def run(weight_pipeline_mode):
        const_specs = [
            const_spec((C, C), weight_pipeline_mode),          # wq (scaled)
            const_spec((C, C), weight_pipeline_mode),          # wk
            const_spec((C, C), weight_pipeline_mode),          # wv
            const_spec((C, out_dim), weight_pipeline_mode),    # wp (flat)
            const_spec((1, out_dim), weight_pipeline_mode),    # proj bias
        ]
        if have_qkv_bias:
            const_specs += [const_spec((1, C), weight_pipeline_mode)
                            for _ in range(3)]
        return pl.pallas_call(
            kernel,
            out_shape=jax.ShapeDtypeStruct((B, N, out_dim), out_dtype),
            grid_spec=pltpu.PrefetchScalarGridSpec(
                num_scalar_prefetch=0,
                grid=grid,
                in_specs=[
                    pl.BlockSpec((batch_block, N, C), lambda b: (b, 0, 0)),
                    pl.BlockSpec((batch_block, Nk, C), lambda b: (b, 0, 0)),
                    pl.BlockSpec((batch_block, Nv, C), lambda b: (b, 0, 0)),
                ] + const_specs,
                out_specs=pl.BlockSpec((batch_block, N, out_dim),
                                       lambda b: (b, 0, 0)),
                scratch_shapes=[pltpu.VMEM((batch_block * N, C), dt)],
            ),
            compiler_params=pltpu.CompilerParams(
                dimension_semantics=("parallel",),
                vmem_limit_bytes=vmem_limit),
        )(x, k, v, wq, wk, wv, wp, bp, *bias_args)

    try:
        # Single-buffer the constant-index weights/biases (halves their VMEM,
        # decisive at production C on v7x's 64 MiB VMEM; free win elsewhere).
        return run(pl.Buffered(1))
    except Exception:
        # Fallback for jax versions without BlockSpec(pipeline_mode=...).
        return run(None)


def cross_attention_ref(x, k, v, params, *, num_heads):
    """Pure-JAX reference mirroring the PyTorch forward (incl. optional qkv_bias)."""
    B, N, C = x.shape
    head_dim = C // num_heads
    scale = head_dim ** (-0.5)
    bq = params.get("bq", None)
    bk = params.get("bk", None)
    bv = params.get("bv", None)
    q = x @ params["wq"].T + (bq if bq is not None else 0.0)
    kk = k @ params["wk"].T + (bk if bk is not None else 0.0)
    vv = v @ params["wv"].T + (bv if bv is not None else 0.0)

    def split(t):
        return t.reshape(B, t.shape[1], num_heads, head_dim).transpose(0, 2, 1, 3)

    qh, kh, vh = split(q) * scale, split(kk), split(vv)
    attn = jax.nn.softmax(qh @ kh.transpose(0, 1, 3, 2), axis=-1)
    out = (attn @ vh).transpose(0, 2, 1, 3).reshape(B, N, C)
    return out @ params["wp"].T + params["bp"]


if __name__ == "__main__":
    # Small shapes consistent with the module: dim=32, num_heads=4 -> head_dim=8.
    B, N, Nk, Nv, dim = 2, 8, 16, 16, 32
    num_heads = 4
    out_dim = dim

    key = jax.random.PRNGKey(0)
    keys = jax.random.split(key, 11)

    x = jax.random.normal(keys[0], (B, N, dim), dtype=jnp.float32)
    k_in = jax.random.normal(keys[1], (B, Nk, dim), dtype=jnp.float32)
    v_in = jax.random.normal(keys[2], (B, Nv, dim), dtype=jnp.float32)

    # PyTorch nn.Linear weight layout: (out_features, in_features).
    params = {
        "wq": jax.random.normal(keys[3], (dim, dim), dtype=jnp.float32) * 0.05,
        "wk": jax.random.normal(keys[4], (dim, dim), dtype=jnp.float32) * 0.05,
        "wv": jax.random.normal(keys[5], (dim, dim), dtype=jnp.float32) * 0.05,
        "wp": jax.random.normal(keys[6], (out_dim, dim), dtype=jnp.float32) * 0.05,
        "bp": jax.random.normal(keys[7], (out_dim,), dtype=jnp.float32) * 0.05,
    }

    # Tolerance 2e-3: the softmax denominator uses the approximate EUP reciprocal.
    TOL = 2e-3

    # Default module config (qkv_bias=False), default (VMEM-derived) batch block.
    out = jax.block_until_ready(
        cross_attention(x, k_in, v_in, params, num_heads=num_heads))
    ref = cross_attention_ref(x, k_in, v_in, params, num_heads=num_heads)
    assert out.shape == (B, N, out_dim)
    assert jnp.allclose(out, ref, atol=TOL, rtol=TOL), "mismatch (no qkv bias)"

    # qkv_bias=True path, explicitly folding both batch elements into one block.
    params_b = dict(
        params,
        bq=jax.random.normal(keys[8], (dim,), dtype=jnp.float32) * 0.05,
        bk=jax.random.normal(keys[9], (dim,), dtype=jnp.float32) * 0.05,
        bv=jax.random.normal(keys[10], (dim,), dtype=jnp.float32) * 0.05,
    )
    out_b = jax.block_until_ready(
        cross_attention(x, k_in, v_in, params_b, num_heads=num_heads,
                        batch_block=2))
    ref_b = cross_attention_ref(x, k_in, v_in, params_b, num_heads=num_heads)
    assert jnp.allclose(out_b, ref_b, atol=TOL, rtol=TOL), "mismatch (qkv bias)"

    print("KERNEL_OK")
</pallas_src>

<mosaic_0001>
module attributes {stable_mosaic.version = 11 : i64} {
  func.func @_cross_attention_kernel(%arg0: i32, %arg1: memref<2x8x32xf32, #tpu.memory_space<vmem>>, %arg2: memref<2x16x32xf32, #tpu.memory_space<vmem>>, %arg3: memref<2x16x32xf32, #tpu.memory_space<vmem>>, %arg4: memref<32x32xf32, #tpu.memory_space<vmem>>, %arg5: memref<32x32xf32, #tpu.memory_space<vmem>>, %arg6: memref<32x32xf32, #tpu.memory_space<vmem>>, %arg7: memref<32x32xf32, #tpu.memory_space<vmem>>, %arg8: memref<1x32xf32, #tpu.memory_space<vmem>>, %arg9: memref<2x8x32xf32, #tpu.memory_space<vmem>>, %arg10: memref<16x32xf32, #tpu.memory_space<vmem>>) attributes {dimension_semantics = [#tpu.dimension_semantics<parallel>], iteration_bounds = array<i64: 1>, scalar_prefetch = 0 : i64, scratch_operands = 1 : i64, tpu.core_type = #tpu.core_type<tc>, window_params = [{transform_indices = @transform_0, window_bounds = array<i64: 2, 8, 32>}, {transform_indices = @transform_1, window_bounds = array<i64: 2, 16, 32>}, {transform_indices = @transform_2, window_bounds = array<i64: 2, 16, 32>}, {pipeline_mode = #tpu.pipeline_mode<synchronous>, transform_indices = @transform_3, window_bounds = array<i64: 32, 32>}, {pipeline_mode = #tpu.pipeline_mode<synchronous>, transform_indices = @transform_4, window_bounds = array<i64: 32, 32>}, {pipeline_mode = #tpu.pipeline_mode<synchronous>, transform_indices = @transform_5, window_bounds = array<i64: 32, 32>}, {pipeline_mode = #tpu.pipeline_mode<synchronous>, transform_indices = @transform_6, window_bounds = array<i64: 32, 32>}, {pipeline_mode = #tpu.pipeline_mode<synchronous>, transform_indices = @transform_7, window_bounds = array<i64: 1, 32>}, {transform_indices = @transform_8, window_bounds = array<i64: 2, 8, 32>}]} {
    %c0 = arith.constant 0 : index
    %c0_0 = arith.constant 0 : index
    %c0_1 = arith.constant 0 : index
    %0 = vector.load %arg1[%c0, %c0_0, %c0_1] : memref<2x8x32xf32, #tpu.memory_space<vmem>>, vector<2x8x32xf32>
    %1 = vector.shape_cast %0 : vector<2x8x32xf32> to vector<16x32xf32>
    %c0_2 = arith.constant 0 : index
    %c0_3 = arith.constant 0 : index
    %c0_4 = arith.constant 0 : index
    %2 = vector.load %arg2[%c0_2, %c0_3, %c0_4] : memref<2x16x32xf32, #tpu.memory_space<vmem>>, vector<2x16x32xf32>
    %3 = vector.shape_cast %2 : vector<2x16x32xf32> to vector<32x32xf32>
    %c0_5 = arith.constant 0 : index
    %c0_6 = arith.constant 0 : index
    %c0_7 = arith.constant 0 : index
    %4 = vector.load %arg3[%c0_5, %c0_6, %c0_7] : memref<2x16x32xf32, #tpu.memory_space<vmem>>, vector<2x16x32xf32>
    %5 = vector.shape_cast %4 : vector<2x16x32xf32> to vector<32x32xf32>
    %c0_8 = arith.constant 0 : index
    %c0_9 = arith.constant 0 : index
    %6 = vector.load %arg4[%c0_8, %c0_9] : memref<32x32xf32, #tpu.memory_space<vmem>>, vector<32x32xf32>
    %cst = arith.constant dense<0.000000e+00> : vector<16x32xf32>
    %7 = tpu.matmul %1, %6, %cst {dimension_numbers = #tpu.dot_dimension_numbers<[1], [0], [0], [1], [0, 0, 1, 1], [], []>} : vector<16x32xf32>, vector<32x32xf32>, vector<16x32xf32> -> vector<16x32xf32>
    %c0_10 = arith.constant 0 : index
    %c0_11 = arith.constant 0 : index
    %8 = vector.load %arg5[%c0_10, %c0_11] : memref<32x32xf32, #tpu.memory_space<vmem>>, vector<32x32xf32>
    %cst_12 = arith.constant dense<0.000000e+00> : vector<32x32xf32>
    %9 = tpu.matmul %3, %8, %cst_12 {dimension_numbers = #tpu.dot_dimension_numbers<[1], [0], [0], [1], [0, 0, 1, 1], [], []>} : vector<32x32xf32>, vector<32x32xf32>, vector<32x32xf32> -> vector<32x32xf32>
    %c0_13 = arith.constant 0 : index
    %c0_14 = arith.constant 0 : index
    %10 = vector.load %arg6[%c0_13, %c0_14] : memref<32x32xf32, #tpu.memory_space<vmem>>, vector<32x32xf32>
    %cst_15 = arith.constant dense<0.000000e+00> : vector<32x32xf32>
    %11 = tpu.matmul %5, %10, %cst_15 {dimension_numbers = #tpu.dot_dimension_numbers<[1], [0], [0], [1], [0, 0, 1, 1], [], []>} : vector<32x32xf32>, vector<32x32xf32>, vector<32x32xf32> -> vector<32x32xf32>
    %12 = vector.shape_cast %7 : vector<16x32xf32> to vector<2x8x32xf32>
    %13 = vector.shape_cast %9 : vector<32x32xf32> to vector<2x16x32xf32>
    %14 = vector.shape_cast %11 : vector<32x32xf32> to vector<2x16x32xf32>
    %15 = vector.extract_strided_slice %12 {offsets = [0, 0, 0], sizes = [2, 8, 8], strides = [1, 1, 1]} : vector<2x8x32xf32> to vector<2x8x8xf32>
    %16 = vector.extract_strided_slice %13 {offsets = [0, 0, 0], sizes = [2, 16, 8], strides = [1, 1, 1]} : vector<2x16x32xf32> to vector<2x16x8xf32>
    %17 = vector.extract_strided_slice %14 {offsets = [0, 0, 0], sizes = [2, 16, 8], strides = [1, 1, 1]} : vector<2x16x32xf32> to vector<2x16x8xf32>
    "tpu.trace_start"() <{level = 10 : i32, message = "bnd,bkd->bnk"}> : () -> ()
    %cst_16 = arith.constant dense<0.000000e+00> : vector<2x8x16xf32>
    %18 = tpu.matmul %15, %16, %cst_16 {dimension_numbers = #tpu.dot_dimension_numbers<[2], [2], [1], [1], [0, 0, 0, 1, 1, 1], [0], [0]>} : vector<2x8x8xf32>, vector<2x16x8xf32>, vector<2x8x16xf32> -> vector<2x8x16xf32>
    "tpu.trace_stop"() : () -> ()
    %cst_17 = arith.constant dense<0xFF800000> : vector<2x8xf32>
    %19 = vector.multi_reduction <maximumf>, %18, %cst_17 [2] : vector<2x8x16xf32> to vector<2x8xf32>
    %20 = vector.shape_cast %19 : vector<2x8xf32> to vector<2x8x1xf32>
    %21 = vector.broadcast %20 : vector<2x8x1xf32> to vector<2x8x16xf32>
    %22 = arith.subf %18, %21 : vector<2x8x16xf32>
    %23 = math.exp %22 : vector<2x8x16xf32>
    %cst_18 = arith.constant dense<0.000000e+00> : vector<2x8xf32>
    %24 = vector.multi_reduction <add>, %23, %cst_18 [2] : vector<2x8x16xf32> to vector<2x8xf32>
    %25 = vector.shape_cast %24 : vector<2x8xf32> to vector<2x8x1xf32>
    %26 = tpu.reciprocal %25 {approx = true} : vector<2x8x1xf32> -> vector<2x8x1xf32>
    %27 = vector.broadcast %26 : vector<2x8x1xf32> to vector<2x8x16xf32>
    %28 = arith.mulf %23, %27 : vector<2x8x16xf32>
    "tpu.trace_start"() <{level = 10 : i32, message = "bnk,bkd->bnd"}> : () -> ()
    %cst_19 = arith.constant dense<0.000000e+00> : vector<2x8x8xf32>
    %29 = tpu.matmul %28, %17, %cst_19 {dimension_numbers = #tpu.dot_dimension_numbers<[2], [1], [1], [2], [0, 0, 0, 1, 1, 2], [0], [0]>} : vector<2x8x16xf32>, vector<2x16x8xf32>, vector<2x8x8xf32> -> vector<2x8x8xf32>
    "tpu.trace_stop"() : () -> ()
    %30 = vector.shape_cast %29 : vector<2x8x8xf32> to vector<16x8xf32>
    %c0_20 = arith.constant 0 : index
    %c0_21 = arith.constant 0 : index
    %31 = vector.load %arg10[%c0_20, %c0_21] : memref<16x32xf32, #tpu.memory_space<vmem>>, vector<16x8xf32>
    tpu.vector_store %arg10[%c0_20, %c0_21], %30 {strides = array<i32>} : memref<16x32xf32, #tpu.memory_space<vmem>>, vector<16x8xf32>,
    %32 = vector.extract_strided_slice %12 {offsets = [0, 0, 8], sizes = [2, 8, 8], strides = [1, 1, 1]} : vector<2x8x32xf32> to vector<2x8x8xf32>
    %33 = vector.extract_strided_slice %13 {offsets = [0, 0, 8], sizes = [2, 16, 8], strides = [1, 1, 1]} : vector<2x16x32xf32> to vector<2x16x8xf32>
    %34 = vector.extract_strided_slice %14 {offsets = [0, 0, 8], sizes = [2, 16, 8], strides = [1, 1, 1]} : vector<2x16x32xf32> to vector<2x16x8xf32>
    "tpu.trace_start"() <{level = 10 : i32, message = "bnd,bkd->bnk"}> : () -> ()
    %cst_22 = arith.constant dense<0.000000e+00> : vector<2x8x16xf32>
    %35 = tpu.matmul %32, %33, %cst_22 {dimension_numbers = #tpu.dot_dimension_numbers<[2], [2], [1], [1], [0, 0, 0, 1, 1, 1], [0], [0]>} : vector<2x8x8xf32>, vector<2x16x8xf32>, vector<2x8x16xf32> -> vector<2x8x16xf32>
    "tpu.trace_stop"() : () -> ()
    %cst_23 = arith.constant dense<0xFF800000> : vector<2x8xf32>
    %36 = vector.multi_reduction <maximumf>, %35, %cst_23 [2] : vector<2x8x16xf32> to vector<2x8xf32>
    %37 = vector.shape_cast %36 : vector<2x8xf32> to vector<2x8x1xf32>
    %38 = vector.broadcast %37 : vector<2x8x1xf32> to vector<2x8x16xf32>
    %39 = arith.subf %35, %38 : vector<2x8x16xf32>
    %40 = math.exp %39 : vector<2x8x16xf32>
    %cst_24 = arith.constant dense<0.000000e+00> : vector<2x8xf32>
    %41 = vector.multi_reduction <add>, %40, %cst_24 [2] : vector<2x8x16xf32> to vector<2x8xf32>
    %42 = vector.shape_cast %41 : vector<2x8xf32> to vector<2x8x1xf32>
    %43 = tpu.reciprocal %42 {approx = true} : vector<2x8x1xf32> -> vector<2x8x1xf32>
    %44 = vector.broadcast %43 : vector<2x8x1xf32> to vector<2x8x16xf32>
    %45 = arith.mulf %40, %44 : vector<2x8x16xf32>
    "tpu.trace_start"() <{level = 10 : i32, message = "bnk,bkd->bnd"}> : () -> ()
    %cst_25 = arith.constant dense<0.000000e+00> : vector<2x8x8xf32>
    %46 = tpu.matmul %45, %34, %cst_25 {dimension_numbers = #tpu.dot_dimension_numbers<[2], [1], [1], [2], [0, 0, 0, 1, 1, 2], [0], [0]>} : vector<2x8x16xf32>, vector<2x16x8xf32>, vector<2x8x8xf32> -> vector<2x8x8xf32>
    "tpu.trace_stop"() : () -> ()
    %47 = vector.shape_cast %46 : vector<2x8x8xf32> to vector<16x8xf32>
    %c0_26 = arith.constant 0 : index
    %c8 = arith.constant 8 : index
    %48 = vector.load %arg10[%c0_26, %c8] : memref<16x32xf32, #tpu.memory_space<vmem>>, vector<16x8xf32>
    tpu.vector_store %arg10[%c0_26, %c8], %47 {strides = array<i32>} : memref<16x32xf32, #tpu.memory_space<vmem>>, vector<16x8xf32>,
    %49 = vector.extract_strided_slice %12 {offsets = [0, 0, 16], sizes = [2, 8, 8], strides = [1, 1, 1]} : vector<2x8x32xf32> to vector<2x8x8xf32>
    %50 = vector.extract_strided_slice %13 {offsets = [0, 0, 16], sizes = [2, 16, 8], strides = [1, 1, 1]} : vector<2x16x32xf32> to vector<2x16x8xf32>
    %51 = vector.extract_strided_slice %14 {offsets = [0, 0, 16], sizes = [2, 16, 8], strides = [1, 1, 1]} : vector<2x16x32xf32> to vector<2x16x8xf32>
    "tpu.trace_start"() <{level = 10 : i32, message = "bnd,bkd->bnk"}> : () -> ()
    %cst_27 = arith.constant dense<0.000000e+00> : vector<2x8x16xf32>
    %52 = tpu.matmul %49, %50, %cst_27 {dimension_numbers = #tpu.dot_dimension_numbers<[2], [2], [1], [1], [0, 0, 0, 1, 1, 1], [0], [0]>} : vector<2x8x8xf32>, vector<2x16x8xf32>, vector<2x8x16xf32> -> vector<2x8x16xf32>
    "tpu.trace_stop"() : () -> ()
    %cst_28 = arith.constant dense<0xFF800000> : vector<2x8xf32>
    %53 = vector.multi_reduction <maximumf>, %52, %cst_28 [2] : vector<2x8x16xf32> to vector<2x8xf32>
    %54 = vector.shape_cast %53 : vector<2x8xf32> to vector<2x8x1xf32>
    %55 = vector.broadcast %54 : vector<2x8x1xf32> to vector<2x8x16xf32>
    %56 = arith.subf %52, %55 : vector<2x8x16xf32>
    %57 = math.exp %56 : vector<2x8x16xf32>
    %cst_29 = arith.constant dense<0.000000e+00> : vector<2x8xf32>
    %58 = vector.multi_reduction <add>, %57, %cst_29 [2] : vector<2x8x16xf32> to vector<2x8xf32>
    %59 = vector.shape_cast %58 : vector<2x8xf32> to vector<2x8x1xf32>
    %60 = tpu.reciprocal %59 {approx = true} : vector<2x8x1xf32> -> vector<2x8x1xf32>
    %61 = vector.broadcast %60 : vector<2x8x1xf32> to vector<2x8x16xf32>
    %62 = arith.mulf %57, %61 : vector<2x8x16xf32>
    "tpu.trace_start"() <{level = 10 : i32, message = "bnk,bkd->bnd"}> : () -> ()
    %cst_30 = arith.constant dense<0.000000e+00> : vector<2x8x8xf32>
    %63 = tpu.matmul %62, %51, %cst_30 {dimension_numbers = #tpu.dot_dimension_numbers<[2], [1], [1], [2], [0, 0, 0, 1, 1, 2], [0], [0]>} : vector<2x8x16xf32>, vector<2x16x8xf32>, vector<2x8x8xf32> -> vector<2x8x8xf32>
    "tpu.trace_stop"() : () -> ()
    %64 = vector.shape_cast %63 : vector<2x8x8xf32> to vector<16x8xf32>
    %c0_31 = arith.constant 0 : index
    %c16 = arith.constant 16 : index
    %65 = vector.load %arg10[%c0_31, %c16] : memref<16x32xf32, #tpu.memory_space<vmem>>, vector<16x8xf32>
    tpu.vector_store %arg10[%c0_31, %c16], %64 {strides = array<i32>} : memref<16x32xf32, #tpu.memory_space<vmem>>, vector<16x8xf32>,
    %66 = vector.extract_strided_slice %12 {offsets = [0, 0, 24], sizes = [2, 8, 8], strides = [1, 1, 1]} : vector<2x8x32xf32> to vector<2x8x8xf32>
    %67 = vector.extract_strided_slice %13 {offsets = [0, 0, 24], sizes = [2, 16, 8], strides = [1, 1, 1]} : vector<2x16x32xf32> to vector<2x16x8xf32>
    %68 = vector.extract_strided_slice %14 {offsets = [0, 0, 24], sizes = [2, 16, 8], strides = [1, 1, 1]} : vector<2x16x32xf32> to vector<2x16x8xf32>
    "tpu.trace_start"() <{level = 10 : i32, message = "bnd,bkd->bnk"}> : () -> ()
    %cst_32 = arith.constant dense<0.000000e+00> : vector<2x8x16xf32>
    %69 = tpu.matmul %66, %67, %cst_32 {dimension_numbers = #tpu.dot_dimension_numbers<[2], [2], [1], [1], [0, 0, 0, 1, 1, 1], [0], [0]>} : vector<2x8x8xf32>, vector<2x16x8xf32>, vector<2x8x16xf32> -> vector<2x8x16xf32>
    "tpu.trace_stop"() : () -> ()
    %cst_33 = arith.constant dense<0xFF800000> : vector<2x8xf32>
    %70 = vector.multi_reduction <maximumf>, %69, %cst_33 [2] : vector<2x8x16xf32> to vector<2x8xf32>
    %71 = vector.shape_cast %70 : vector<2x8xf32> to vector<2x8x1xf32>
    %72 = vector.broadcast %71 : vector<2x8x1xf32> to vector<2x8x16xf32>
    %73 = arith.subf %69, %72 : vector<2x8x16xf32>
    %74 = math.exp %73 : vector<2x8x16xf32>
    %cst_34 = arith.constant dense<0.000000e+00> : vector<2x8xf32>
    %75 = vector.multi_reduction <add>, %74, %cst_34 [2] : vector<2x8x16xf32> to vector<2x8xf32>
    %76 = vector.shape_cast %75 : vector<2x8xf32> to vector<2x8x1xf32>
    %77 = tpu.reciprocal %76 {approx = true} : vector<2x8x1xf32> -> vector<2x8x1xf32>
    %78 = vector.broadcast %77 : vector<2x8x1xf32> to vector<2x8x16xf32>
    %79 = arith.mulf %74, %78 : vector<2x8x16xf32>
    "tpu.trace_start"() <{level = 10 : i32, message = "bnk,bkd->bnd"}> : () -> ()
    %cst_35 = arith.constant dense<0.000000e+00> : vector<2x8x8xf32>
    %80 = tpu.matmul %79, %68, %cst_35 {dimension_numbers = #tpu.dot_dimension_numbers<[2], [1], [1], [2], [0, 0, 0, 1, 1, 2], [0], [0]>} : vector<2x8x16xf32>, vector<2x16x8xf32>, vector<2x8x8xf32> -> vector<2x8x8xf32>
    "tpu.trace_stop"() : () -> ()
    %81 = vector.shape_cast %80 : vector<2x8x8xf32> to vector<16x8xf32>
    %c0_36 = arith.constant 0 : index
    %c24 = arith.constant 24 : index
    %82 = vector.load %arg10[%c0_36, %c24] : memref<16x32xf32, #tpu.memory_space<vmem>>, vector<16x8xf32>
    tpu.vector_store %arg10[%c0_36, %c24], %81 {strides = array<i32>} : memref<16x32xf32, #tpu.memory_space<vmem>>, vector<16x8xf32>,
    %c0_37 = arith.constant 0 : index
    %c0_38 = arith.constant 0 : index
    %83 = vector.load %arg10[%c0_37, %c0_38] : memref<16x32xf32, #tpu.memory_space<vmem>>, vector<16x32xf32>
    %c0_39 = arith.constant 0 : index
    %c0_40 = arith.constant 0 : index
    %84 = vector.load %arg7[%c0_39, %c0_40] : memref<32x32xf32, #tpu.memory_space<vmem>>, vector<32x32xf32>
    %cst_41 = arith.constant dense<0.000000e+00> : vector<16x32xf32>
    %85 = tpu.matmul %83, %84, %cst_41 {dimension_numbers = #tpu.dot_dimension_numbers<[1], [0], [0], [1], [0, 0, 1, 1], [], []>} : vector<16x32xf32>, vector<32x32xf32>, vector<16x32xf32> -> vector<16x32xf32>
    %c0_42 = arith.constant 0 : index
    %c0_43 = arith.constant 0 : index
    %86 = vector.load %arg8[%c0_42, %c0_43] : memref<1x32xf32, #tpu.memory_space<vmem>>, vector<1x32xf32>
    %87 = vector.broadcast %86 : vector<1x32xf32> to vector<16x32xf32>
    %88 = arith.addf %85, %87 : vector<16x32xf32>
    %89 = vector.shape_cast %88 : vector<16x32xf32> to vector<2x8x32xf32>
    %c0_44 = arith.constant 0 : index
    %c0_45 = arith.constant 0 : index
    %c0_46 = arith.constant 0 : index
    %90 = vector.load %arg9[%c0_44, %c0_45, %c0_46] : memref<2x8x32xf32, #tpu.memory_space<vmem>>, vector<2x8x32xf32>
    tpu.vector_store %arg9[%c0_44, %c0_45, %c0_46], %89 {strides = array<i32>} : memref<2x8x32xf32, #tpu.memory_space<vmem>>, vector<2x8x32xf32>,
    return
  }
  func.func @transform_0(%arg0: i32) -> (i32, i32, i32) {
    %c0_i32 = arith.constant 0 : i32
    %c0_i32_0 = arith.constant 0 : i32
    %c0_i32_1 = arith.constant 0 : i32
    return %arg0, %c0_i32, %c0_i32_0 : i32, i32, i32
  }
  func.func @transform_1(%arg0: i32) -> (i32, i32, i32) {
    %c0_i32 = arith.constant 0 : i32
    %c0_i32_0 = arith.constant 0 : i32
    %c0_i32_1 = arith.constant 0 : i32
    return %arg0, %c0_i32, %c0_i32_0 : i32, i32, i32
  }
  func.func @transform_2(%arg0: i32) -> (i32, i32, i32) {
    %c0_i32 = arith.constant 0 : i32
    %c0_i32_0 = arith.constant 0 : i32
    %c0_i32_1 = arith.constant 0 : i32
    return %arg0, %c0_i32, %c0_i32_0 : i32, i32, i32
  }
  func.func @transform_3(%arg0: i32) -> (i32, i32) {
    %c0_i32 = arith.constant 0 : i32
    %c0_i32_0 = arith.constant 0 : i32
    %c0_i32_1 = arith.constant 0 : i32
    return %c0_i32, %c0_i32_0 : i32, i32
  }
  func.func @transform_4(%arg0: i32) -> (i32, i32) {
    %c0_i32 = arith.constant 0 : i32
    %c0_i32_0 = arith.constant 0 : i32
    %c0_i32_1 = arith.constant 0 : i32
    return %c0_i32, %c0_i32_0 : i32, i32
  }
  func.func @transform_5(%arg0: i32) -> (i32, i32) {
    %c0_i32 = arith.constant 0 : i32
    %c0_i32_0 = arith.constant 0 : i32
    %c0_i32_1 = arith.constant 0 : i32
    return %c0_i32, %c0_i32_0 : i32, i32
  }
  func.func @transform_6(%arg0: i32) -> (i32, i32) {
    %c0_i32 = arith.constant 0 : i32
    %c0_i32_0 = arith.constant 0 : i32
    %c0_i32_1 = arith.constant 0 : i32
    return %c0_i32, %c0_i32_0 : i32, i32
  }
  func.func @transform_7(%arg0: i32) -> (i32, i32) {
    %c0_i32 = arith.constant 0 : i32
    %c0_i32_0 = arith.constant 0 : i32
    %c0_i32_1 = arith.constant 0 : i32
    return %c0_i32, %c0_i32_0 : i32, i32
  }
  func.func @transform_8(%arg0: i32) -> (i32, i32, i32) {
    %c0_i32 = arith.constant 0 : i32
    %c0_i32_0 = arith.constant 0 : i32
    %c0_i32_1 = arith.constant 0 : i32
    return %arg0, %c0_i32, %c0_i32_0 : i32, i32, i32
  }
}

module attributes {stable_mosaic.version = 11 : i64} {
  func.func @_cross_attention_kernel(%arg0: i32, %arg1: memref<2x8x32xf32, #tpu.memory_space<vmem>>, %arg2: memref<2x16x32xf32, #tpu.memory_space<vmem>>, %arg3: memref<2x16x32xf32, #tpu.memory_space<vmem>>, %arg4: memref<32x32xf32, #tpu.memory_space<vmem>>, %arg5: memref<32x32xf32, #tpu.memory_space<vmem>>, %arg6: memref<32x32xf32, #tpu.memory_space<vmem>>, %arg7: memref<32x32xf32, #tpu.memory_space<vmem>>, %arg8: memref<1x32xf32, #tpu.memory_space<vmem>>, %arg9: memref<2x8x32xf32, #tpu.memory_space<vmem>>, %arg10: memref<16x32xf32, #tpu.memory_space<vmem>>) attributes {dimension_semantics = [#tpu.dimension_semantics<parallel>], iteration_bounds = array<i64: 1>, scalar_prefetch = 0 : i64, scratch_operands = 1 : i64, tpu.core_type = #tpu.core_type<tc>, window_params = [{transform_indices = @transform_0, window_bounds = array<i64: 2, 8, 32>}, {transform_indices = @transform_1, window_bounds = array<i64: 2, 16, 32>}, {transform_indices = @transform_2, window_bounds = array<i64: 2, 16, 32>}, {pipeline_mode = #tpu.pipeline_mode<synchronous>, transform_indices = @transform_3, window_bounds = array<i64: 32, 32>}, {pipeline_mode = #tpu.pipeline_mode<synchronous>, transform_indices = @transform_4, window_bounds = array<i64: 32, 32>}, {pipeline_mode = #tpu.pipeline_mode<synchronous>, transform_indices = @transform_5, window_bounds = array<i64: 32, 32>}, {pipeline_mode = #tpu.pipeline_mode<synchronous>, transform_indices = @transform_6, window_bounds = array<i64: 32, 32>}, {pipeline_mode = #tpu.pipeline_mode<synchronous>, transform_indices = @transform_7, window_bounds = array<i64: 1, 32>}, {transform_indices = @transform_8, window_bounds = array<i64: 2, 8, 32>}]} {
    %c0 = arith.constant 0 : index
    %c0_0 = arith.constant 0 : index
    %c0_1 = arith.constant 0 : index
    %0 = vector.load %arg1[%c0, %c0_0, %c0_1] : memref<2x8x32xf32, #tpu.memory_space<vmem>>, vector<2x8x32xf32>
    %1 = vector.shape_cast %0 : vector<2x8x32xf32> to vector<16x32xf32>
    %c0_2 = arith.constant 0 : index
    %c0_3 = arith.constant 0 : index
    %c0_4 = arith.constant 0 : index
    %2 = vector.load %arg2[%c0_2, %c0_3, %c0_4] : memref<2x16x32xf32, #tpu.memory_space<vmem>>, vector<2x16x32xf32>
    %3 = vector.shape_cast %2 : vector<2x16x32xf32> to vector<32x32xf32>
    %c0_5 = arith.constant 0 : index
    %c0_6 = arith.constant 0 : index
    %c0_7 = arith.constant 0 : index
    %4 = vector.load %arg3[%c0_5, %c0_6, %c0_7] : memref<2x16x32xf32, #tpu.memory_space<vmem>>, vector<2x16x32xf32>
    %5 = vector.shape_cast %4 : vector<2x16x32xf32> to vector<32x32xf32>
    %c0_8 = arith.constant 0 : index
    %c0_9 = arith.constant 0 : index
    %6 = vector.load %arg4[%c0_8, %c0_9] : memref<32x32xf32, #tpu.memory_space<vmem>>, vector<32x32xf32>
    %cst = arith.constant dense<0.000000e+00> : vector<16x32xf32>
    %7 = tpu.matmul %1, %6, %cst {dimension_numbers = #tpu.dot_dimension_numbers<[1], [0], [0], [1], [0, 0, 1, 1], [], []>} : vector<16x32xf32>, vector<32x32xf32>, vector<16x32xf32> -> vector<16x32xf32>
    %c0_10 = arith.constant 0 : index
    %c0_11 = arith.constant 0 : index
    %8 = vector.load %arg5[%c0_10, %c0_11] : memref<32x32xf32, #tpu.memory_space<vmem>>, vector<32x32xf32>
    %cst_12 = arith.constant dense<0.000000e+00> : vector<32x32xf32>
    %9 = tpu.matmul %3, %8, %cst_12 {dimension_numbers = #tpu.dot_dimension_numbers<[1], [0], [0], [1], [0, 0, 1, 1], [], []>} : vector<32x32xf32>, vector<32x32xf32>, vector<32x32xf32> -> vector<32x32xf32>
    %c0_13 = arith.constant 0 : index
    %c0_14 = arith.constant 0 : index
    %10 = vector.load %arg6[%c0_13, %c0_14] : memref<32x32xf32, #tpu.memory_space<vmem>>, vector<32x32xf32>
    %cst_15 = arith.constant dense<0.000000e+00> : vector<32x32xf32>
    %11 = tpu.matmul %5, %10, %cst_15 {dimension_numbers = #tpu.dot_dimension_numbers<[1], [0], [0], [1], [0, 0, 1, 1], [], []>} : vector<32x32xf32>, vector<32x32xf32>, vector<32x32xf32> -> vector<32x32xf32>
    %12 = vector.shape_cast %7 : vector<16x32xf32> to vector<2x8x32xf32>
    %13 = vector.shape_cast %9 : vector<32x32xf32> to vector<2x16x32xf32>
    %14 = vector.shape_cast %11 : vector<32x32xf32> to vector<2x16x32xf32>
    %15 = vector.extract_strided_slice %12 {offsets = [0, 0, 0], sizes = [2, 8, 8], strides = [1, 1, 1]} : vector<2x8x32xf32> to vector<2x8x8xf32>
    %16 = vector.extract_strided_slice %13 {offsets = [0, 0, 0], sizes = [2, 16, 8], strides = [1, 1, 1]} : vector<2x16x32xf32> to vector<2x16x8xf32>
    %17 = vector.extract_strided_slice %14 {offsets = [0, 0, 0], sizes = [2, 16, 8], strides = [1, 1, 1]} : vector<2x16x32xf32> to vector<2x16x8xf32>
    "tpu.trace_start"() <{level = 10 : i32, message = "bnd,bkd->bnk"}> : () -> ()
    %cst_16 = arith.constant dense<0.000000e+00> : vector<2x8x16xf32>
    %18 = tpu.matmul %15, %16, %cst_16 {dimension_numbers = #tpu.dot_dimension_numbers<[2], [2], [1], [1], [0, 0, 0, 1, 1, 1], [0], [0]>} : vector<2x8x8xf32>, vector<2x16x8xf32>, vector<2x8x16xf32> -> vector<2x8x16xf32>
    "tpu.trace_stop"() : () -> ()
    %cst_17 = arith.constant dense<0xFF800000> : vector<2x8xf32>
    %19 = vector.multi_reduction <maximumf>, %18, %cst_17 [2] : vector<2x8x16xf32> to vector<2x8xf32>
    %20 = vector.shape_cast %19 : vector<2x8xf32> to vector<2x8x1xf32>
    %21 = vector.broadcast %20 : vector<2x8x1xf32> to vector<2x8x16xf32>
    %22 = arith.subf %18, %21 : vector<2x8x16xf32>
    %23 = math.exp %22 : vector<2x8x16xf32>
    %cst_18 = arith.constant dense<0.000000e+00> : vector<2x8xf32>
    %24 = vector.multi_reduction <add>, %23, %cst_18 [2] : vector<2x8x16xf32> to vector<2x8xf32>
    %25 = vector.shape_cast %24 : vector<2x8xf32> to vector<2x8x1xf32>
    %26 = tpu.reciprocal %25 {approx = true} : vector<2x8x1xf32> -> vector<2x8x1xf32>
    %27 = vector.broadcast %26 : vector<2x8x1xf32> to vector<2x8x16xf32>
    %28 = arith.mulf %23, %27 : vector<2x8x16xf32>
    "tpu.trace_start"() <{level = 10 : i32, message = "bnk,bkd->bnd"}> : () -> ()
    %cst_19 = arith.constant dense<0.000000e+00> : vector<2x8x8xf32>
    %29 = tpu.matmul %28, %17, %cst_19 {dimension_numbers = #tpu.dot_dimension_numbers<[2], [1], [1], [2], [0, 0, 0, 1, 1, 2], [0], [0]>} : vector<2x8x16xf32>, vector<2x16x8xf32>, vector<2x8x8xf32> -> vector<2x8x8xf32>
    "tpu.trace_stop"() : () -> ()
    %30 = vector.shape_cast %29 : vector<2x8x8xf32> to vector<16x8xf32>
    %c0_20 = arith.constant 0 : index
    %c0_21 = arith.constant 0 : index
    %31 = vector.load %arg10[%c0_20, %c0_21] : memref<16x32xf32, #tpu.memory_space<vmem>>, vector<16x8xf32>
    tpu.vector_store %arg10[%c0_20, %c0_21], %30 {strides = array<i32>} : memref<16x32xf32, #tpu.memory_space<vmem>>, vector<16x8xf32>,
    %32 = vector.extract_strided_slice %12 {offsets = [0, 0, 8], sizes = [2, 8, 8], strides = [1, 1, 1]} : vector<2x8x32xf32> to vector<2x8x8xf32>
    %33 = vector.extract_strided_slice %13 {offsets = [0, 0, 8], sizes = [2, 16, 8], strides = [1, 1, 1]} : vector<2x16x32xf32> to vector<2x16x8xf32>
    %34 = vector.extract_strided_slice %14 {offsets = [0, 0, 8], sizes = [2, 16, 8], strides = [1, 1, 1]} : vector<2x16x32xf32> to vector<2x16x8xf32>
    "tpu.trace_start"() <{level = 10 : i32, message = "bnd,bkd->bnk"}> : () -> ()
    %cst_22 = arith.constant dense<0.000000e+00> : vector<2x8x16xf32>
    %35 = tpu.matmul %32, %33, %cst_22 {dimension_numbers = #tpu.dot_dimension_numbers<[2], [2], [1], [1], [0, 0, 0, 1, 1, 1], [0], [0]>} : vector<2x8x8xf32>, vector<2x16x8xf32>, vector<2x8x16xf32> -> vector<2x8x16xf32>
    "tpu.trace_stop"() : () -> ()
    %cst_23 = arith.constant dense<0xFF800000> : vector<2x8xf32>
    %36 = vector.multi_reduction <maximumf>, %35, %cst_23 [2] : vector<2x8x16xf32> to vector<2x8xf32>
    %37 = vector.shape_cast %36 : vector<2x8xf32> to vector<2x8x1xf32>
    %38 = vector.broadcast %37 : vector<2x8x1xf32> to vector<2x8x16xf32>
    %39 = arith.subf %35, %38 : vector<2x8x16xf32>
    %40 = math.exp %39 : vector<2x8x16xf32>
    %cst_24 = arith.constant dense<0.000000e+00> : vector<2x8xf32>
    %41 = vector.multi_reduction <add>, %40, %cst_24 [2] : vector<2x8x16xf32> to vector<2x8xf32>
    %42 = vector.shape_cast %41 : vector<2x8xf32> to vector<2x8x1xf32>
    %43 = tpu.reciprocal %42 {approx = true} : vector<2x8x1xf32> -> vector<2x8x1xf32>
    %44 = vector.broadcast %43 : vector<2x8x1xf32> to vector<2x8x16xf32>
    %45 = arith.mulf %40, %44 : vector<2x8x16xf32>
    "tpu.trace_start"() <{level = 10 : i32, message = "bnk,bkd->bnd"}> : () -> ()
    %cst_25 = arith.constant dense<0.000000e+00> : vector<2x8x8xf32>
    %46 = tpu.matmul %45, %34, %cst_25 {dimension_numbers = #tpu.dot_dimension_numbers<[2], [1], [1], [2], [0, 0, 0, 1, 1, 2], [0], [0]>} : vector<2x8x16xf32>, vector<2x16x8xf32>, vector<2x8x8xf32> -> vector<2x8x8xf32>
    "tpu.trace_stop"() : () -> ()
    %47 = vector.shape_cast %46 : vector<2x8x8xf32> to vector<16x8xf32>
    %c0_26 = arith.constant 0 : index
    %c8 = arith.constant 8 : index
    %48 = vector.load %arg10[%c0_26, %c8] : memref<16x32xf32, #tpu.memory_space<vmem>>, vector<16x8xf32>
    tpu.vector_store %arg10[%c0_26, %c8], %47 {strides = array<i32>} : memref<16x32xf32, #tpu.memory_space<vmem>>, vector<16x8xf32>,
    %49 = vector.extract_strided_slice %12 {offsets = [0, 0, 16], sizes = [2, 8, 8], strides = [1, 1, 1]} : vector<2x8x32xf32> to vector<2x8x8xf32>
    %50 = vector.extract_strided_slice %13 {offsets = [0, 0, 16], sizes = [2, 16, 8], strides = [1, 1, 1]} : vector<2x16x32xf32> to vector<2x16x8xf32>
    %51 = vector.extract_strided_slice %14 {offsets = [0, 0, 16], sizes = [2, 16, 8], strides = [1, 1, 1]} : vector<2x16x32xf32> to vector<2x16x8xf32>
    "tpu.trace_start"() <{level = 10 : i32, message = "bnd,bkd->bnk"}> : () -> ()
    %cst_27 = arith.constant dense<0.000000e+00> : vector<2x8x16xf32>
    %52 = tpu.matmul %49, %50, %cst_27 {dimension_numbers = #tpu.dot_dimension_numbers<[2], [2], [1], [1], [0, 0, 0, 1, 1, 1], [0], [0]>} : vector<2x8x8xf32>, vector<2x16x8xf32>, vector<2x8x16xf32> -> vector<2x8x16xf32>
    "tpu.trace_stop"() : () -> ()
    %cst_28 = arith.constant dense<0xFF800000> : vector<2x8xf32>
    %53 = vector.multi_reduction <maximumf>, %52, %cst_28 [2] : vector<2x8x16xf32> to vector<2x8xf32>
    %54 = vector.shape_cast %53 : vector<2x8xf32> to vector<2x8x1xf32>
    %55 = vector.broadcast %54 : vector<2x8x1xf32> to vector<2x8x16xf32>
    %56 = arith.subf %52, %55 : vector<2x8x16xf32>
    %57 = math.exp %56 : vector<2x8x16xf32>
    %cst_29 = arith.constant dense<0.000000e+00> : vector<2x8xf32>
    %58 = vector.multi_reduction <add>, %57, %cst_29 [2] : vector<2x8x16xf32> to vector<2x8xf32>
    %59 = vector.shape_cast %58 : vector<2x8xf32> to vector<2x8x1xf32>
    %60 = tpu.reciprocal %59 {approx = true} : vector<2x8x1xf32> -> vector<2x8x1xf32>
    %61 = vector.broadcast %60 : vector<2x8x1xf32> to vector<2x8x16xf32>
    %62 = arith.mulf %57, %61 : vector<2x8x16xf32>
    "tpu.trace_start"() <{level = 10 : i32, message = "bnk,bkd->bnd"}> : () -> ()
    %cst_30 = arith.constant dense<0.000000e+00> : vector<2x8x8xf32>
    %63 = tpu.matmul %62, %51, %cst_30 {dimension_numbers = #tpu.dot_dimension_numbers<[2], [1], [1], [2], [0, 0, 0, 1, 1, 2], [0], [0]>} : vector<2x8x16xf32>, vector<2x16x8xf32>, vector<2x8x8xf32> -> vector<2x8x8xf32>
    "tpu.trace_stop"() : () -> ()
    %64 = vector.shape_cast %63 : vector<2x8x8xf32> to vector<16x8xf32>
    %c0_31 = arith.constant 0 : index
    %c16 = arith.constant 16 : index
    %65 = vector.load %arg10[%c0_31, %c16] : memref<16x32xf32, #tpu.memory_space<vmem>>, vector<16x8xf32>
    tpu.vector_store %arg10[%c0_31, %c16], %64 {strides = array<i32>} : memref<16x32xf32, #tpu.memory_space<vmem>>, vector<16x8xf32>,
    %66 = vector.extract_strided_slice %12 {offsets = [0, 0, 24], sizes = [2, 8, 8], strides = [1, 1, 1]} : vector<2x8x32xf32> to vector<2x8x8xf32>
    %67 = vector.extract_strided_slice %13 {offsets = [0, 0, 24], sizes = [2, 16, 8], strides = [1, 1, 1]} : vector<2x16x32xf32> to vector<2x16x8xf32>
    %68 = vector.extract_strided_slice %14 {offsets = [0, 0, 24], sizes = [2, 16, 8], strides = [1, 1, 1]} : vector<2x16x32xf32> to vector<2x16x8xf32>
    "tpu.trace_start"() <{level = 10 : i32, message = "bnd,bkd->bnk"}> : () -> ()
    %cst_32 = arith.constant dense<0.000000e+00> : vector<2x8x16xf32>
    %69 = tpu.matmul %66, %67, %cst_32 {dimension_numbers = #tpu.dot_dimension_numbers<[2], [2], [1], [1], [0, 0, 0, 1, 1, 1], [0], [0]>} : vector<2x8x8xf32>, vector<2x16x8xf32>, vector<2x8x16xf32> -> vector<2x8x16xf32>
    "tpu.trace_stop"() : () -> ()
    %cst_33 = arith.constant dense<0xFF800000> : vector<2x8xf32>
    %70 = vector.multi_reduction <maximumf>, %69, %cst_33 [2] : vector<2x8x16xf32> to vector<2x8xf32>
    %71 = vector.shape_cast %70 : vector<2x8xf32> to vector<2x8x1xf32>
    %72 = vector.broadcast %71 : vector<2x8x1xf32> to vector<2x8x16xf32>
    %73 = arith.subf %69, %72 : vector<2x8x16xf32>
    %74 = math.exp %73 : vector<2x8x16xf32>
    %cst_34 = arith.constant dense<0.000000e+00> : vector<2x8xf32>
    %75 = vector.multi_reduction <add>, %74, %cst_34 [2] : vector<2x8x16xf32> to vector<2x8xf32>
    %76 = vector.shape_cast %75 : vector<2x8xf32> to vector<2x8x1xf32>
    %77 = tpu.reciprocal %76 {approx = true} : vector<2x8x1xf32> -> vector<2x8x1xf32>
    %78 = vector.broadcast %77 : vector<2x8x1xf32> to vector<2x8x16xf32>
    %79 = arith.mulf %74, %78 : vector<2x8x16xf32>
    "tpu.trace_start"() <{level = 10 : i32, message = "bnk,bkd->bnd"}> : () -> ()
    %cst_35 = arith.constant dense<0.000000e+00> : vector<2x8x8xf32>
    %80 = tpu.matmul %79, %68, %cst_35 {dimension_numbers = #tpu.dot_dimension_numbers<[2], [1], [1], [2], [0, 0, 0, 1, 1, 2], [0], [0]>} : vector<2x8x16xf32>, vector<2x16x8xf32>, vector<2x8x8xf32> -> vector<2x8x8xf32>
    "tpu.trace_stop"() : () -> ()
    %81 = vector.shape_cast %80 : vector<2x8x8xf32> to vector<16x8xf32>
    %c0_36 = arith.constant 0 : index
    %c24 = arith.constant 24 : index
    %82 = vector.load %arg10[%c0_36, %c24] : memref<16x32xf32, #tpu.memory_space<vmem>>, vector<16x8xf32>
    tpu.vector_store %arg10[%c0_36, %c24], %81 {strides = array<i32>} : memref<16x32xf32, #tpu.memory_space<vmem>>, vector<16x8xf32>,
    %c0_37 = arith.constant 0 : index
    %c0_38 = arith.constant 0 : index
    %83 = vector.load %arg10[%c0_37, %c0_38] : memref<16x32xf32, #tpu.memory_space<vmem>>, vector<16x32xf32>
    %c0_39 = arith.constant 0 : index
    %c0_40 = arith.constant 0 : index
    %84 = vector.load %arg7[%c0_39, %c0_40] : memref<32x32xf32, #tpu.memory_space<vmem>>, vector<32x32xf32>
    %cst_41 = arith.constant dense<0.000000e+00> : vector<16x32xf32>
    %85 = tpu.matmul %83, %84, %cst_41 {dimension_numbers = #tpu.dot_dimension_numbers<[1], [0], [0], [1], [0, 0, 1, 1], [], []>} : vector<16x32xf32>, vector<32x32xf32>, vector<16x32xf32> -> vector<16x32xf32>
    %c0_42 = arith.constant 0 : index
    %c0_43 = arith.constant 0 : index
    %86 = vector.load %arg8[%c0_42, %c0_43] : memref<1x32xf32, #tpu.memory_space<vmem>>, vector<1x32xf32>
    %87 = vector.broadcast %86 : vector<1x32xf32> to vector<16x32xf32>
    %88 = arith.addf %85, %87 : vector<16x32xf32>
    %89 = vector.shape_cast %88 : vector<16x32xf32> to vector<2x8x32xf32>
    %c0_44 = arith.constant 0 : index
    %c0_45 = arith.constant 0 : index
    %c0_46 = arith.constant 0 : index
    %90 = vector.load %arg9[%c0_44, %c0_45, %c0_46] : memref<2x8x32xf32, #tpu.memory_space<vmem>>, vector<2x8x32xf32>
    tpu.vector_store %arg9[%c0_44, %c0_45, %c0_46], %89 {strides = array<i32>} : memref<2x8x32xf32, #tpu.memory_space<vmem>>, vector<2x8x32xf32>,
    return
  }
  func.func @transform_0(%arg0: i32) -> (i32, i32, i32) {
    %c0_i32 = arith.constant 0 : i32
    %c0_i32_0 = arith.constant 0 : i32
    %c0_i32_1 = arith.constant 0 : i32
    return %arg0, %c0_i32, %c0_i32_0 : i32, i32, i32
  }
  func.func @transform_1(%arg0: i32) -> (i32, i32, i32) {
    %c0_i32 = arith.constant 0 : i32
    %c0_i32_0 = arith.constant 0 : i32
    %c0_i32_1 = arith.constant 0 : i32
    return %arg0, %c0_i32, %c0_i32_0 : i32, i32, i32
  }
  func.func @transform_2(%arg0: i32) -> (i32, i32, i32) {
    %c0_i32 = arith.constant 0 : i32
    %c0_i32_0 = arith.constant 0 : i32
    %c0_i32_1 = arith.constant 0 : i32
    return %arg0, %c0_i32, %c0_i32_0 : i32, i32, i32
  }
  func.func @transform_3(%arg0: i32) -> (i32, i32) {
    %c0_i32 = arith.constant 0 : i32
    %c0_i32_0 = arith.constant 0 : i32
    %c0_i32_1 = arith.constant 0 : i32
    return %c0_i32, %c0_i32_0 : i32, i32
  }
  func.func @transform_4(%arg0: i32) -> (i32, i32) {
    %c0_i32 = arith.constant 0 : i32
    %c0_i32_0 = arith.constant 0 : i32
    %c0_i32_1 = arith.constant 0 : i32
    return %c0_i32, %c0_i32_0 : i32, i32
  }
  func.func @transform_5(%arg0: i32) -> (i32, i32) {
    %c0_i32 = arith.constant 0 : i32
    %c0_i32_0 = arith.constant 0 : i32
    %c0_i32_1 = arith.constant 0 : i32
    return %c0_i32, %c0_i32_0 : i32, i32
  }
  func.func @transform_6(%arg0: i32) -> (i32, i32) {
    %c0_i32 = arith.constant 0 : i32
    %c0_i32_0 = arith.constant 0 : i32
    %c0_i32_1 = arith.constant 0 : i32
    return %c0_i32, %c0_i32_0 : i32, i32
  }
  func.func @transform_7(%arg0: i32) -> (i32, i32) {
    %c0_i32 = arith.constant 0 : i32
    %c0_i32_0 = arith.constant 0 : i32
    %c0_i32_1 = arith.constant 0 : i32
    return %c0_i32, %c0_i32_0 : i32, i32
  }
  func.func @transform_8(%arg0: i32) -> (i32, i32, i32) {
    %c0_i32 = arith.constant 0 : i32
    %c0_i32_0 = arith.constant 0 : i32
    %c0_i32_1 = arith.constant 0 : i32
    return %arg0, %c0_i32, %c0_i32_0 : i32, i32, i32
  }
}

</mosaic_0001>

<llo_original>
// kernel: tpu_custom_call.1
$region0: #{tpu_custom_call.1}
  #allocation0 [shape = 'u32[]', space=smem, size = 0x4, offset = 0x4, fixed_abs, tag = 'smem constant byte address 0x4 - core index']
  #allocation1 [shape = 'u32[72,128]{1,0:T(1,128)}', space=vmem, size = 0x9000, scoped, tag = 'internal scratch']
  #allocation2 [shape = 'f32[16,32]{1,0:T(8,128)}', space=vmem, size = 0x2000, scoped, tag = 'scratch operand']
  %s0 = inlined_call_operand.hbm [shape: f32[2,8,32], index: 0, kind: input, shape index: {}]
  %s1 = inlined_call_operand.hbm [shape: f32[2,16,32], index: 1, kind: input, shape index: {}]
  %s2 = inlined_call_operand.hbm [shape: f32[2,16,32], index: 2, kind: input, shape index: {}]
  %s3 = inlined_call_operand.hbm [shape: f32[32,32], index: 3, kind: input, shape index: {}]
  %s4 = inlined_call_operand.hbm [shape: f32[32,32], index: 4, kind: input, shape index: {}]
  %s5 = inlined_call_operand.hbm [shape: f32[32,32], index: 5, kind: input, shape index: {}]
  %s6 = inlined_call_operand.hbm [shape: f32[32,32], index: 6, kind: input, shape index: {}]
  %s7 = inlined_call_operand.vmem [shape: f32[1,32], index: 7, kind: input, shape index: {}]
  %s8 = inlined_call_operand.hbm [shape: f32[2,8,32], index: 8, kind: output, shape index: {}]
  %s9 = sld [smem:[#allocation0]]
  $region70: #{tpu_custom_call.1} parent=0
    _
  %s11 = ssub.s32 1, %s9
  %s12 = scalar_select 0, %s11, %s9
  $region1: #{tpu_custom_call.1} parent=0
    #allocation3 [shape = 'u8[8192]{0}', space=vmem, size = 0x2000, scoped, tag = 'input window, operand 0, single buffered']
    #allocation4 [shape = 's32[1]{0}', space=sflag, size = 0x4, scoped, tag = 'scoped memory for tpu_custom_call.1']
    #allocation5 [shape = 's32[1]{0}', space=sflag, size = 0x4, scoped, tag = 'scoped memory for tpu_custom_call.1']
    #allocation6 [shape = 'u8[16384]{0}', space=vmem, size = 0x4000, scoped, tag = 'input window, operand 1, single buffered']
    #allocation7 [shape = 's32[1]{0}', space=sflag, size = 0x4, scoped, tag = 'scoped memory for tpu_custom_call.1']
    #allocation8 [shape = 'u8[16384]{0}', space=vmem, size = 0x4000, scoped, tag = 'input window, operand 2, single buffered']
    #allocation9 [shape = 'u8[16384]{0}', space=vmem, size = 0x4000, scoped, tag = 'input window, operand 3, single buffered']
    #allocation10 [shape = 's32[1]{0}', space=sflag, size = 0x4, scoped, tag = 'scoped memory for tpu_custom_call.1']
    #allocation11 [shape = 'u8[16384]{0}', space=vmem, size = 0x4000, scoped, tag = 'input window, operand 4, single buffered']
    #allocation12 [shape = 'u8[16384]{0}', space=vmem, size = 0x4000, scoped, tag = 'input window, operand 5, single buffered']
    #allocation13 [shape = 's32[1]{0}', space=sflag, size = 0x4, scoped, tag = 'scoped memory for tpu_custom_call.1']
    #allocation14 [shape = 'u8[16384]{0}', space=vmem, size = 0x4000, scoped, tag = 'input window, operand 6, single buffered']
    #allocation15 [shape = 'u8[8192]{0}', space=vmem, size = 0x2000, scoped, tag = 'output window, operand 0, single buffered']
    %13 = vsyncpa [#allocation4], 0
    %14 = vsyncpa [#allocation7], 0
    %15 = vsyncpa [#allocation10], 0
    %16 = vsyncpa [#allocation13], 0
    %17 = vsyncpa [#allocation5], 0
    // Predicated region
    $region2: #{tpu_custom_call.1} parent=1 // pred_check
      _
    $region3: #{tpu_custom_call.1} parent=1 // pred_check_branch
      %19 = sbr.rel (0) target = $region5
    $region4: #{tpu_custom_call.1} parent=1 // pred_region
      %21 = vsyncadd [#allocation4], 0
      %s22 = sshll.u32 %s0, 4
      %s23 = int_to_ptr.hbm [resolvable:$true] %s22
      %s24 = sshll.u32 [#allocation3], 4
      %s25 = int_to_ptr.vmem [resolvable:$true] %s24
      %30 = dma.hbm_to_vmem [thread:$0]  %s23, 256, %s25, [#allocation4], 128, 128, 8
    $region5: #{tpu_custom_call.1} parent=1 // pred_fallthru
      _
    // Predicated region
    $region6: #{tpu_custom_call.1} parent=1 // pred_check
      _
    $region7: #{tpu_custom_call.1} parent=1 // pred_check_branch
      %32 = sbr.rel (0) target = $region9
    $region8: #{tpu_custom_call.1} parent=1 // pred_region
      %34 = vsyncadd [#allocation7], 0
      %s35 = sshll.u32 %s1, 4
      %s36 = int_to_ptr.hbm [resolvable:$true] %s35
      %s37 = sshll.u32 [#allocation6], 4
      %s38 = int_to_ptr.vmem [resolvable:$true] %s37
      %43 = dma.hbm_to_vmem [thread:$0]  %s36, 512, %s38, [#allocation7], 128, 128, 8
    $region9: #{tpu_custom_call.1} parent=1 // pred_fallthru
      _
    // Predicated region
    $region10: #{tpu_custom_call.1} parent=1 // pred_check
      _
    $region11: #{tpu_custom_call.1} parent=1 // pred_check_branch
      %45 = sbr.rel (0) target = $region13
    $region12: #{tpu_custom_call.1} parent=1 // pred_region
      %47 = vsyncadd [#allocation7], 0
      %s48 = sshll.u32 %s2, 4
      %s49 = int_to_ptr.hbm [resolvable:$true] %s48
      %s50 = sshll.u32 [#allocation8], 4
      %s51 = int_to_ptr.vmem [resolvable:$true] %s50
      %56 = dma.hbm_to_vmem [thread:$0]  %s49, 512, %s51, [#allocation7], 128, 128, 8
    $region13: #{tpu_custom_call.1} parent=1 // pred_fallthru
      _
    // Predicated region
    $region14: #{tpu_custom_call.1} parent=1 // pred_check
      _
    $region15: #{tpu_custom_call.1} parent=1 // pred_check_branch
      %58 = sbr.rel (0) target = $region17
    $region16: #{tpu_custom_call.1} parent=1 // pred_region
      %60 = vsyncadd [#allocation10], 0
      %s61 = sshll.u32 %s3, 4
      %s62 = int_to_ptr.hbm [resolvable:$true] %s61
      %s63 = sshll.u32 [#allocation9], 4
      %s64 = int_to_ptr.vmem [resolvable:$true] %s63
      %69 = dma.hbm_to_vmem [thread:$0]  %s62, 512, %s64, [#allocation10], 128, 128, 8
    $region17: #{tpu_custom_call.1} parent=1 // pred_fallthru
      _
    // Predicated region
    $region18: #{tpu_custom_call.1} parent=1 // pred_check
      _
    $region19: #{tpu_custom_call.1} parent=1 // pred_check_branch
      %71 = sbr.rel (0) target = $region21
    $region20: #{tpu_custom_call.1} parent=1 // pred_region
      %73 = vsyncadd [#allocation10], 0
      %s74 = sshll.u32 %s4, 4
      %s75 = int_to_ptr.hbm [resolvable:$true] %s74
      %s76 = sshll.u32 [#allocation11], 4
      %s77 = int_to_ptr.vmem [resolvable:$true] %s76
      %82 = dma.hbm_to_vmem [thread:$0]  %s75, 512, %s77, [#allocation10], 128, 128, 8
    $region21: #{tpu_custom_call.1} parent=1 // pred_fallthru
      _
    // Predicated region
    $region22: #{tpu_custom_call.1} parent=1 // pred_check
      _
    $region23: #{tpu_custom_call.1} parent=1 // pred_check_branch
      %84 = sbr.rel (0) target = $region25
    $region24: #{tpu_custom_call.1} parent=1 // pred_region
      %86 = vsyncadd [#allocation13], 0
      %s87 = sshll.u32 %s5, 4
      %s88 = int_to_ptr.hbm [resolvable:$true] %s87
      %s89 = sshll.u32 [#allocation12], 4
      %s90 = int_to_ptr.vmem [resolvable:$true] %s89
      %95 = dma.hbm_to_vmem [thread:$0]  %s88, 512, %s90, [#allocation13], 128, 128, 8
    $region25: #{tpu_custom_call.1} parent=1 // pred_fallthru
      _
    // Predicated region
    $region26: #{tpu_custom_call.1} parent=1 // pred_check
      _
    $region27: #{tpu_custom_call.1} parent=1 // pred_check_branch
      %97 = sbr.rel (0) target = $region29
    $region28: #{tpu_custom_call.1} parent=1 // pred_region
      %99 = vsyncadd [#allocation13], 0
      %s100 = sshll.u32 %s6, 4
      %s101 = int_to_ptr.hbm [resolvable:$true] %s100
      %s102 = sshll.u32 [#allocation14], 4
      %s103 = int_to_ptr.vmem [resolvable:$true] %s102
      %108 = dma.hbm_to_vmem [thread:$0]  %s101, 512, %s103, [#allocation13], 128, 128, 8
    $region29: #{tpu_custom_call.1} parent=1 // pred_fallthru
      _
    // Predicated region
    $region30: #{tpu_custom_call.1} parent=1 // pred_check
      _
    $region31: #{tpu_custom_call.1} parent=1 // pred_check_branch
      %110 = sbr.rel (0) target = $region33
    $region32: #{tpu_custom_call.1} parent=1 // pred_region
      _
    $region33: #{tpu_custom_call.1} parent=1 // pred_fallthru
      _
    // Predicated region
    $region34: #{tpu_custom_call.1} parent=1 // pred_check
      _
    $region35: #{tpu_custom_call.1} parent=1 // pred_check_branch
      %112 = sbr.rel (0) target = $region37
    $region36: #{tpu_custom_call.1} parent=1 // pred_region
      %114 = dma.done [#allocation4], 256
    $region37: #{tpu_custom_call.1} parent=1 // pred_fallthru
      _
    // Predicated region
    $region38: #{tpu_custom_call.1} parent=1 // pred_check
      _
    $region39: #{tpu_custom_call.1} parent=1 // pred_check_branch
      %116 = sbr.rel (0) target = $region41
    $region40: #{tpu_custom_call.1} parent=1 // pred_region
      %118 = dma.done [#allocation7], 512
    $region41: #{tpu_custom_call.1} parent=1 // pred_fallthru
      _
    // Predicated region
    $region42: #{tpu_custom_call.1} parent=1 // pred_check
      _
    $region43: #{tpu_custom_call.1} parent=1 // pred_check_branch
      %120 = sbr.rel (0) target = $region45
    $region44: #{tpu_custom_call.1} parent=1 // pred_region
      %122 = dma.done [#allocation7], 512
    $region45: #{tpu_custom_call.1} parent=1 // pred_fallthru
      _
    // Predicated region
    $region46: #{tpu_custom_call.1} parent=1 // pred_check
      _
    $region47: #{tpu_custom_call.1} parent=1 // pred_check_branch
      %124 = sbr.rel (0) target = $region49
    $region48: #{tpu_custom_call.1} parent=1 // pred_region
      %126 = dma.done [#allocation10], 512
    $region49: #{tpu_custom_call.1} parent=1 // pred_fallthru
      _
    // Predicated region
    $region50: #{tpu_custom_call.1} parent=1 // pred_check
      _
    $region51: #{tpu_custom_call.1} parent=1 // pred_check_branch
      %128 = sbr.rel (0) target = $region53
    $region52: #{tpu_custom_call.1} parent=1 // pred_region
      %130 = dma.done [#allocation10], 512
    $region53: #{tpu_custom_call.1} parent=1 // pred_fallthru
      _
    // Predicated region
    $region54: #{tpu_custom_call.1} parent=1 // pred_check
      _
    $region55: #{tpu_custom_call.1} parent=1 // pred_check_branch
      %132 = sbr.rel (0) target = $region57
    $region56: #{tpu_custom_call.1} parent=1 // pred_region
      %134 = dma.done [#allocation13], 512
    $region57: #{tpu_custom_call.1} parent=1 // pred_fallthru
      _
    // Predicated region
    $region58: #{tpu_custom_call.1} parent=1 // pred_check
      _
    $region59: #{tpu_custom_call.1} parent=1 // pred_check_branch
      %136 = sbr.rel (0) target = $region61
    $region60: #{tpu_custom_call.1} parent=1 // pred_region
      %138 = dma.done [#allocation13], 512
    $region61: #{tpu_custom_call.1} parent=1 // pred_fallthru
      _
    %v139 = vld [vmem:[#allocation3] sm:$0xff]
    %v140 = vld [vmem:[#allocation3 + $0x8] sm:$0xff]
    %v141 = vld [vmem:[#allocation6] sm:$0xff]
    %v142 = vld [vmem:[#allocation6 + $0x8] sm:$0xff]
    %v143 = vld [vmem:[#allocation6 + $0x10] sm:$0xff]
    %v144 = vld [vmem:[#allocation6 + $0x18] sm:$0xff]
    %v145 = vld [vmem:[#allocation8] sm:$0xff]
    %v146 = vld [vmem:[#allocation8 + $0x8] sm:$0xff]
    %v147 = vld [vmem:[#allocation8 + $0x10] sm:$0xff]
    %v148 = vld [vmem:[#allocation8 + $0x18] sm:$0xff]
    %v149 = vld [vmem:[#allocation9] sm:$0xff]
    %v150 = vld [vmem:[#allocation9 + $0x8] sm:$0xff]
    %v151 = vld [vmem:[#allocation9 + $0x10] sm:$0xff]
    %v152 = vld [vmem:[#allocation9 + $0x18] sm:$0xff]
    %vm153 = vcmask 261120
    %v155 = vsel %vm153, %v139, 0
    %v158 = vsel %vm153, %v140, 0
    %160 = vmatpush.msra.mxu0 0.0
    %161 = vmatpush.msra.mxu0 0.0
    %162 = vmatpush.msra.mxu0 0.0
    %163 = vmatpush.msra.mxu0 0.0
    %164 = vmatpush.msra.mxu0 0.0
    %165 = vmatpush.msra.mxu0 0.0
    %166 = vmatpush.msra.mxu0 0.0
    %167 = vmatpush.msra.mxu0 0.0
    %168 = vmatpush.msra.mxu0 0.0
    %169 = vmatpush.msra.mxu0 0.0
    %170 = vmatpush.msra.mxu0 0.0
    %171 = vmatpush.msra.mxu0 0.0
    %172 = vmatpush.msra.mxu0 %v152
    %173 = vmatpush.msra.mxu0 %v151
    %174 = vmatpush.msra.mxu0 %v150
    %175 = vmatpush.msra.mxu0 %v149
    %176 = vmatmul.f32.gmra.mxu0 %v155
    %v177 = vpop.f32.mrf.mxu0
    %v178 = vadd.f32 0.0, %v177
    %179 = vmatmul.f32.gmra.mxu0 %v158
    %v180 = vpop.f32.mrf.mxu0
    %v181 = vadd.f32 0.0, %v180
    %182 = vdwg.mxu0
    %v183 = vld [vmem:[#allocation11] sm:$0xff]
    %v184 = vld [vmem:[#allocation11 + $0x8] sm:$0xff]
    %v185 = vld [vmem:[#allocation11 + $0x10] sm:$0xff]
    %v186 = vld [vmem:[#allocation11 + $0x18] sm:$0xff]
    %v188 = vsel %vm153, %v141, 0
    %v191 = vsel %vm153, %v142, 0
    %v194 = vsel %vm153, %v143, 0
    %v197 = vsel %vm153, %v144, 0
    %199 = vmatpush.msra.mxu0 0.0
    %200 = vmatpush.msra.mxu0 0.0
    %201 = vmatpush.msra.mxu0 0.0
    %202 = vmatpush.msra.mxu0 0.0
    %203 = vmatpush.msra.mxu0 0.0
    %204 = vmatpush.msra.mxu0 0.0
    %205 = vmatpush.msra.mxu0 0.0
    %206 = vmatpush.msra.mxu0 0.0
    %207 = vmatpush.msra.mxu0 0.0
    %208 = vmatpush.msra.mxu0 0.0
    %209 = vmatpush.msra.mxu0 0.0
    %210 = vmatpush.msra.mxu0 0.0
    %211 = vmatpush.msra.mxu0 %v186
    %212 = vmatpush.msra.mxu0 %v185
    %213 = vmatpush.msra.mxu0 %v184
    %214 = vmatpush.msra.mxu0 %v183
    %215 = vmatmul.f32.gmra.mxu0 %v188
    %v216 = vpop.f32.mrf.mxu0
    %v217 = vadd.f32 0.0, %v216
    %218 = vmatmul.f32.gmra.mxu0 %v191
    %v219 = vpop.f32.mrf.mxu0
    %v220 = vadd.f32 0.0, %v219
    %221 = vmatmul.f32.gmra.mxu0 %v194
    %v222 = vpop.f32.mrf.mxu0
    %v223 = vadd.f32 0.0, %v222
    %224 = vmatmul.f32.gmra.mxu0 %v197
    %v225 = vpop.f32.mrf.mxu0
    %v226 = vadd.f32 0.0, %v225
    %227 = vdwg.mxu0
    %v228 = vld [vmem:[#allocation12] sm:$0xff]
    %v229 = vld [vmem:[#allocation12 + $0x8] sm:$0xff]
    %v230 = vld [vmem:[#allocation12 + $0x10] sm:$0xff]
    %v231 = vld [vmem:[#allocation12 + $0x18] sm:$0xff]
    %v233 = vsel %vm153, %v145, 0
    %v236 = vsel %vm153, %v146, 0
    %v239 = vsel %vm153, %v147, 0
    %v242 = vsel %vm153, %v148, 0
    %244 = vmatpush.msra.mxu0 0.0
    %245 = vmatpush.msra.mxu0 0.0
    %246 = vmatpush.msra.mxu0 0.0
    %247 = vmatpush.msra.mxu0 0.0
    %248 = vmatpush.msra.mxu0 0.0
    %249 = vmatpush.msra.mxu0 0.0
    %250 = vmatpush.msra.mxu0 0.0
    %251 = vmatpush.msra.mxu0 0.0
    %252 = vmatpush.msra.mxu0 0.0
    %253 = vmatpush.msra.mxu0 0.0
    %254 = vmatpush.msra.mxu0 0.0
    %255 = vmatpush.msra.mxu0 0.0
    %256 = vmatpush.msra.mxu0 %v231
    %257 = vmatpush.msra.mxu0 %v230
    %258 = vmatpush.msra.mxu0 %v229
    %259 = vmatpush.msra.mxu0 %v228
    %260 = vmatmul.f32.gmra.mxu0 %v233
    %v261 = vpop.f32.mrf.mxu0
    %v262 = vadd.f32 0.0, %v261
    %263 = vmatmul.f32.gmra.mxu0 %v236
    %v264 = vpop.f32.mrf.mxu0
    %v265 = vadd.f32 0.0, %v264
    %266 = vmatmul.f32.gmra.mxu0 %v239
    %v267 = vpop.f32.mrf.mxu0
    %v268 = vadd.f32 0.0, %v267
    %269 = vmatmul.f32.gmra.mxu0 %v242
    %v270 = vpop.f32.mrf.mxu0
    %v271 = vadd.f32 0.0, %v270
    %272 = vdwg.mxu0
    %vm273 = vcmask 64512
    %v275 = vsel %vm273, %v178, 0
    %v278 = vsel %vm273, %v217, 0
    %v281 = vsel %vm273, %v220, 0
    %283 = vmatpush.xpose.msra.mxu0 0.0
    %284 = vmatpush.xpose.msra.mxu0 0.0
    %285 = vmatpush.xpose.msra.mxu0 0.0
    %286 = vmatpush.xpose.msra.mxu0 0.0
    %287 = vmatpush.xpose.msra.mxu0 0.0
    %288 = vmatpush.xpose.msra.mxu0 0.0
    %289 = vmatpush.xpose.msra.mxu0 0.0
    %290 = vmatpush.xpose.msra.mxu0 0.0
    %291 = vmatpush.xpose.msra.mxu0 0.0
    %292 = vmatpush.xpose.msra.mxu0 0.0
    %293 = vmatpush.xpose.msra.mxu0 0.0
    %294 = vmatpush.xpose.msra.mxu0 0.0
    %295 = vmatpush.xpose.msra.mxu0 0.0
    %296 = vmatpush.xpose.msra.mxu0 0.0
    %297 = vmatpush.xpose.msra.mxu0 %v281
    %298 = vmatpush.xpose.msra.mxu0 %v278
    %299 = vmatmul.f32.gmra.mxu0 %v275
    %v300 = vpop.f32.mrf.mxu0
    %v301 = vadd.f32 0.0, %v300
    %302 = vdwg.mxu0
    %v304 = vsel %vm273, %v181, 0
    %v307 = vsel %vm273, %v223, 0
    %v310 = vsel %vm273, %v226, 0
    %312 = vmatpush.xpose.msra.mxu0 0.0
    %313 = vmatpush.xpose.msra.mxu0 0.0
    %314 = vmatpush.xpose.msra.mxu0 0.0
    %315 = vmatpush.xpose.msra.mxu0 0.0
    %316 = vmatpush.xpose.msra.mxu0 0.0
    %317 = vmatpush.xpose.msra.mxu0 0.0
    %318 = vmatpush.xpose.msra.mxu0 0.0
    %319 = vmatpush.xpose.msra.mxu0 0.0
    %320 = vmatpush.xpose.msra.mxu0 0.0
    %321 = vmatpush.xpose.msra.mxu0 0.0
    %322 = vmatpush.xpose.msra.mxu0 0.0
    %323 = vmatpush.xpose.msra.mxu0 0.0
    %324 = vmatpush.xpose.msra.mxu0 0.0
    %325 = vmatpush.xpose.msra.mxu0 0.0
    %326 = vmatpush.xpose.msra.mxu0 %v310
    %327 = vmatpush.xpose.msra.mxu0 %v307
    %328 = vmatmul.f32.gmra.mxu0 %v304
    %v329 = vpop.f32.mrf.mxu0
    %v330 = vadd.f32 0.0, %v329
    %331 = vdwg.mxu0
    %vm332 = vcmask 130048
    %v333 = vsel %vm332, %v301, -inf
    %334 = vmax.xlane.f32.xlu0 %v333
    %v335 = vpop.xlane.xlu0 %334
    %v336 = vsel %vm332, %v330, -inf
    %337 = vmax.xlane.f32.xlu0 %v336
    %v338 = vpop.xlane.xlu0 %337
    %v339 = vsub.f32 %v301, %v335
    %v340 = vsub.f32 %v330, %v338
    %v341 = vmul.f32 %v339, 1.442695
    %v342 = vpow.pop %v341
    %v343 = vmul.f32 %v340, 1.442695
    %v344 = vpow.pop %v343
    %v345 = vsel %vm332, %v342, 0.0
    %346 = vadd.xlane.f32.xlu0 %v345
    %v347 = vpop.xlane.xlu0 %346
    %v348 = vsel %vm332, %v344, 0.0
    %349 = vadd.xlane.f32.xlu0 %v348
    %v350 = vpop.xlane.xlu0 %349
    %v351 = vrcp.pop %v347
    %v352 = vrcp.pop %v350
    %v353 = vmul.f32 %v342, %v351
    %v354 = vmul.f32 %v344, %v352
    %v356 = vsel %vm332, %v353, 0
    %358 = vmatpush.msra.mxu0 0.0
    %359 = vmatpush.msra.mxu0 0.0
    %360 = vmatpush.msra.mxu0 0.0
    %361 = vmatpush.msra.mxu0 0.0
    %362 = vmatpush.msra.mxu0 0.0
    %363 = vmatpush.msra.mxu0 0.0
    %364 = vmatpush.msra.mxu0 0.0
    %365 = vmatpush.msra.mxu0 0.0
    %366 = vmatpush.msra.mxu0 0.0
    %367 = vmatpush.msra.mxu0 0.0
    %368 = vmatpush.msra.mxu0 0.0
    %369 = vmatpush.msra.mxu0 0.0
    %370 = vmatpush.msra.mxu0 0.0
    %371 = vmatpush.msra.mxu0 0.0
    %372 = vmatpush.msra.mxu0 %v265
    %373 = vmatpush.msra.mxu0 %v262
    %374 = vmatmul.f32.gmra.mxu0 %v356
    %v375 = vpop.f32.mrf.mxu0
    %v376 = vadd.f32 0.0, %v375
    %377 = vdwg.mxu0
    %v379 = vsel %vm332, %v354, 0
    %381 = vmatpush.msra.mxu0 0.0
    %382 = vmatpush.msra.mxu0 0.0
    %383 = vmatpush.msra.mxu0 0.0
    %384 = vmatpush.msra.mxu0 0.0
    %385 = vmatpush.msra.mxu0 0.0
    %386 = vmatpush.msra.mxu0 0.0
    %387 = vmatpush.msra.mxu0 0.0
    %388 = vmatpush.msra.mxu0 0.0
    %389 = vmatpush.msra.mxu0 0.0
    %390 = vmatpush.msra.mxu0 0.0
    %391 = vmatpush.msra.mxu0 0.0
    %392 = vmatpush.msra.mxu0 0.0
    %393 = vmatpush.msra.mxu0 0.0
    %394 = vmatpush.msra.mxu0 0.0
    %395 = vmatpush.msra.mxu0 %v271
    %396 = vmatpush.msra.mxu0 %v268
    %397 = vmatmul.f32.gmra.mxu0 %v379
    %v398 = vpop.f32.mrf.mxu0
    %v399 = vadd.f32 0.0, %v398
    %400 = vdwg.mxu0
    %401 = vst.msk [vmem:[#allocation2] sm:$0xff] %vm273, %v376
    %402 = vst.msk [vmem:[#allocation2 + $0x8] sm:$0xff] %vm273, %v399
    %403 = vrot.lane.b32.xlu0 %v178, 120
    %v404 = vpop.permute.xlu0 %403
    %405 = vrot.lane.b32.xlu0 %v217, 120
    %v406 = vpop.permute.xlu0 %405
    %407 = vrot.lane.b32.xlu0 %v220, 120
    %v408 = vpop.permute.xlu0 %407
    %v409 = vsel %vm273, %v404, 0
    %v411 = vsel %vm273, %v406, 0
    %v413 = vsel %vm273, %v408, 0
    %415 = vmatpush.xpose.msra.mxu0 0.0
    %416 = vmatpush.xpose.msra.mxu0 0.0
    %417 = vmatpush.xpose.msra.mxu0 0.0
    %418 = vmatpush.xpose.msra.mxu0 0.0
    %419 = vmatpush.xpose.msra.mxu0 0.0
    %420 = vmatpush.xpose.msra.mxu0 0.0
    %421 = vmatpush.xpose.msra.mxu0 0.0
    %422 = vmatpush.xpose.msra.mxu0 0.0
    %423 = vmatpush.xpose.msra.mxu0 0.0
    %424 = vmatpush.xpose.msra.mxu0 0.0
    %425 = vmatpush.xpose.msra.mxu0 0.0
    %426 = vmatpush.xpose.msra.mxu0 0.0
    %427 = vmatpush.xpose.msra.mxu0 0.0
    %428 = vmatpush.xpose.msra.mxu0 0.0
    %429 = vmatpush.xpose.msra.mxu0 %v413
    %430 = vmatpush.xpose.msra.mxu0 %v411
    %431 = vmatmul.f32.gmra.mxu0 %v409
    %v432 = vpop.f32.mrf.mxu0
    %v433 = vadd.f32 0.0, %v432
    %434 = vdwg.mxu0
    %435 = vrot.lane.b32.xlu0 %v181, 120
    %v436 = vpop.permute.xlu0 %435
    %437 = vrot.lane.b32.xlu0 %v223, 120
    %v438 = vpop.permute.xlu0 %437
    %439 = vrot.lane.b32.xlu0 %v226, 120
    %v440 = vpop.permute.xlu0 %439
    %v441 = vsel %vm273, %v436, 0
    %v443 = vsel %vm273, %v438, 0
    %v445 = vsel %vm273, %v440, 0
    %447 = vmatpush.xpose.msra.mxu0 0.0
    %448 = vmatpush.xpose.msra.mxu0 0.0
    %449 = vmatpush.xpose.msra.mxu0 0.0
    %450 = vmatpush.xpose.msra.mxu0 0.0
    %451 = vmatpush.xpose.msra.mxu0 0.0
    %452 = vmatpush.xpose.msra.mxu0 0.0
    %453 = vmatpush.xpose.msra.mxu0 0.0
    %454 = vmatpush.xpose.msra.mxu0 0.0
    %455 = vmatpush.xpose.msra.mxu0 0.0
    %456 = vmatpush.xpose.msra.mxu0 0.0
    %457 = vmatpush.xpose.msra.mxu0 0.0
    %458 = vmatpush.xpose.msra.mxu0 0.0
    %459 = vmatpush.xpose.msra.mxu0 0.0
    %460 = vmatpush.xpose.msra.mxu0 0.0
    %461 = vmatpush.xpose.msra.mxu0 %v445
    %462 = vmatpush.xpose.msra.mxu0 %v443
    %463 = vmatmul.f32.gmra.mxu0 %v441
    %v464 = vpop.f32.mrf.mxu0
    %v465 = vadd.f32 0.0, %v464
    %466 = vdwg.mxu0
    %v467 = vsel %vm332, %v433, -inf
    %468 = vmax.xlane.f32.xlu0 %v467
    %v469 = vpop.xlane.xlu0 %468
    %v470 = vsel %vm332, %v465, -inf
    %471 = vmax.xlane.f32.xlu0 %v470
    %v472 = vpop.xlane.xlu0 %471
    %v473 = vsub.f32 %v433, %v469
    %v474 = vsub.f32 %v465, %v472
    %v475 = vmul.f32 %v473, 1.442695
    %v476 = vpow.pop %v475
    %v477 = vmul.f32 %v474, 1.442695
    %v478 = vpow.pop %v477
    %v479 = vsel %vm332, %v476, 0.0
    %480 = vadd.xlane.f32.xlu0 %v479
    %v481 = vpop.xlane.xlu0 %480
    %v482 = vsel %vm332, %v478, 0.0
    %483 = vadd.xlane.f32.xlu0 %v482
    %v484 = vpop.xlane.xlu0 %483
    %v485 = vrcp.pop %v481
    %v486 = vrcp.pop %v484
    %v487 = vmul.f32 %v476, %v485
    %v488 = vmul.f32 %v478, %v486
    %491 = vrot.lane.b32.xlu0 %v262, 120
    %v492 = vpop.permute.xlu0 %491
    %493 = vrot.lane.b32.xlu0 %v265, 120
    %v494 = vpop.permute.xlu0 %493
    %v498 = vsel %vm332, %v487, 0
    %500 = vmatpush.msra.mxu0 0.0
    %501 = vmatpush.msra.mxu0 0.0
    %502 = vmatpush.msra.mxu0 0.0
    %503 = vmatpush.msra.mxu0 0.0
    %504 = vmatpush.msra.mxu0 0.0
    %505 = vmatpush.msra.mxu0 0.0
    %506 = vmatpush.msra.mxu0 0.0
    %507 = vmatpush.msra.mxu0 0.0
    %508 = vmatpush.msra.mxu0 0.0
    %509 = vmatpush.msra.mxu0 0.0
    %510 = vmatpush.msra.mxu0 0.0
    %511 = vmatpush.msra.mxu0 0.0
    %512 = vmatpush.msra.mxu0 0.0
    %513 = vmatpush.msra.mxu0 0.0
    %514 = vmatpush.msra.mxu0 %v494
    %515 = vmatpush.msra.mxu0 %v492
    %516 = vmatmul.f32.gmra.mxu0 %v498
    %v517 = vpop.f32.mrf.mxu0
    %v518 = vadd.f32 0.0, %v517
    %519 = vdwg.mxu0
    %522 = vrot.lane.b32.xlu0 %v268, 120
    %v523 = vpop.permute.xlu0 %522
    %524 = vrot.lane.b32.xlu0 %v271, 120
    %v525 = vpop.permute.xlu0 %524
    %v529 = vsel %vm332, %v488, 0
    %531 = vmatpush.msra.mxu0 0.0
    %532 = vmatpush.msra.mxu0 0.0
    %533 = vmatpush.msra.mxu0 0.0
    %534 = vmatpush.msra.mxu0 0.0
    %535 = vmatpush.msra.mxu0 0.0
    %536 = vmatpush.msra.mxu0 0.0
    %537 = vmatpush.msra.mxu0 0.0
    %538 = vmatpush.msra.mxu0 0.0
    %539 = vmatpush.msra.mxu0 0.0
    %540 = vmatpush.msra.mxu0 0.0
    %541 = vmatpush.msra.mxu0 0.0
    %542 = vmatpush.msra.mxu0 0.0
    %543 = vmatpush.msra.mxu0 0.0
    %544 = vmatpush.msra.mxu0 0.0
    %545 = vmatpush.msra.mxu0 %v525
    %546 = vmatpush.msra.mxu0 %v523
    %547 = vmatmul.f32.gmra.mxu0 %v529
    %v548 = vpop.f32.mrf.mxu0
    %v549 = vadd.f32 0.0, %v548
    %550 = vdwg.mxu0
    %553 = vrot.lane.b32.xlu0 %v518, 8
    %v554 = vpop.permute.xlu0 %553
    %555 = vrot.lane.b32.xlu0 %v549, 8
    %v556 = vpop.permute.xlu0 %555
    %vm559 = vcmask 130112
    %560 = vst.msk [vmem:[#allocation2] sm:$0xff] %vm559, %v554
    %561 = vst.msk [vmem:[#allocation2 + $0x8] sm:$0xff] %vm559, %v556
    %562 = vrot.lane.b32.xlu0 %v178, 112
    %v563 = vpop.permute.xlu0 %562
    %564 = vrot.lane.b32.xlu0 %v217, 112
    %v565 = vpop.permute.xlu0 %564
    %566 = vrot.lane.b32.xlu0 %v220, 112
    %v567 = vpop.permute.xlu0 %566
    %v568 = vsel %vm273, %v563, 0
    %v570 = vsel %vm273, %v565, 0
    %v572 = vsel %vm273, %v567, 0
    %574 = vmatpush.xpose.msra.mxu0 0.0
    %575 = vmatpush.xpose.msra.mxu0 0.0
    %576 = vmatpush.xpose.msra.mxu0 0.0
    %577 = vmatpush.xpose.msra.mxu0 0.0
    %578 = vmatpush.xpose.msra.mxu0 0.0
    %579 = vmatpush.xpose.msra.mxu0 0.0
    %580 = vmatpush.xpose.msra.mxu0 0.0
    %581 = vmatpush.xpose.msra.mxu0 0.0
    %582 = vmatpush.xpose.msra.mxu0 0.0
    %583 = vmatpush.xpose.msra.mxu0 0.0
    %584 = vmatpush.xpose.msra.mxu0 0.0
    %585 = vmatpush.xpose.msra.mxu0 0.0
    %586 = vmatpush.xpose.msra.mxu0 0.0
    %587 = vmatpush.xpose.msra.mxu0 0.0
    %588 = vmatpush.xpose.msra.mxu0 %v572
    %589 = vmatpush.xpose.msra.mxu0 %v570
    %590 = vmatmul.f32.gmra.mxu0 %v568
    %v591 = vpop.f32.mrf.mxu0
    %v592 = vadd.f32 0.0, %v591
    %593 = vdwg.mxu0
    %594 = vrot.lane.b32.xlu0 %v181, 112
    %v595 = vpop.permute.xlu0 %594
    %596 = vrot.lane.b32.xlu0 %v223, 112
    %v597 = vpop.permute.xlu0 %596
    %598 = vrot.lane.b32.xlu0 %v226, 112
    %v599 = vpop.permute.xlu0 %598
    %v600 = vsel %vm273, %v595, 0
    %v602 = vsel %vm273, %v597, 0
    %v604 = vsel %vm273, %v599, 0
    %606 = vmatpush.xpose.msra.mxu0 0.0
    %607 = vmatpush.xpose.msra.mxu0 0.0
    %608 = vmatpush.xpose.msra.mxu0 0.0
    %609 = vmatpush.xpose.msra.mxu0 0.0
    %610 = vmatpush.xpose.msra.mxu0 0.0
    %611 = vmatpush.xpose.msra.mxu0 0.0
    %612 = vmatpush.xpose.msra.mxu0 0.0
    %613 = vmatpush.xpose.msra.mxu0 0.0
    %614 = vmatpush.xpose.msra.mxu0 0.0
    %615 = vmatpush.xpose.msra.mxu0 0.0
    %616 = vmatpush.xpose.msra.mxu0 0.0
    %617 = vmatpush.xpose.msra.mxu0 0.0
    %618 = vmatpush.xpose.msra.mxu0 0.0
    %619 = vmatpush.xpose.msra.mxu0 0.0
    %620 = vmatpush.xpose.msra.mxu0 %v604
    %621 = vmatpush.xpose.msra.mxu0 %v602
    %622 = vmatmul.f32.gmra.mxu0 %v600
    %v623 = vpop.f32.mrf.mxu0
    %v624 = vadd.f32 0.0, %v623
    %625 = vdwg.mxu0
    %v626 = vsel %vm332, %v592, -inf
    %627 = vmax.xlane.f32.xlu0 %v626
    %v628 = vpop.xlane.xlu0 %627
    %v629 = vsel %vm332, %v624, -inf
    %630 = vmax.xlane.f32.xlu0 %v629
    %v631 = vpop.xlane.xlu0 %630
    %v632 = vsub.f32 %v592, %v628
    %v633 = vsub.f32 %v624, %v631
    %v634 = vmul.f32 %v632, 1.442695
    %v635 = vpow.pop %v634
    %v636 = vmul.f32 %v633, 1.442695
    %v637 = vpow.pop %v636
    %v638 = vsel %vm332, %v635, 0.0
    %639 = vadd.xlane.f32.xlu0 %v638
    %v640 = vpop.xlane.xlu0 %639
    %v641 = vsel %vm332, %v637, 0.0
    %642 = vadd.xlane.f32.xlu0 %v641
    %v643 = vpop.xlane.xlu0 %642
    %v644 = vrcp.pop %v640
    %v645 = vrcp.pop %v643
    %v646 = vmul.f32 %v635, %v644
    %v647 = vmul.f32 %v637, %v645
    %648 = vrot.lane.b32.xlu0 %v262, 112
    %v649 = vpop.permute.xlu0 %648
    %650 = vrot.lane.b32.xlu0 %v265, 112
    %v651 = vpop.permute.xlu0 %650
    %v655 = vsel %vm332, %v646, 0
    %657 = vmatpush.msra.mxu0 0.0
    %658 = vmatpush.msra.mxu0 0.0
    %659 = vmatpush.msra.mxu0 0.0
    %660 = vmatpush.msra.mxu0 0.0
    %661 = vmatpush.msra.mxu0 0.0
    %662 = vmatpush.msra.mxu0 0.0
    %663 = vmatpush.msra.mxu0 0.0
    %664 = vmatpush.msra.mxu0 0.0
    %665 = vmatpush.msra.mxu0 0.0
    %666 = vmatpush.msra.mxu0 0.0
    %667 = vmatpush.msra.mxu0 0.0
    %668 = vmatpush.msra.mxu0 0.0
    %669 = vmatpush.msra.mxu0 0.0
    %670 = vmatpush.msra.mxu0 0.0
    %671 = vmatpush.msra.mxu0 %v651
    %672 = vmatpush.msra.mxu0 %v649
    %673 = vmatmul.f32.gmra.mxu0 %v655
    %v674 = vpop.f32.mrf.mxu0
    %v675 = vadd.f32 0.0, %v674
    %676 = vdwg.mxu0
    %677 = vrot.lane.b32.xlu0 %v268, 112
    %v678 = vpop.permute.xlu0 %677
    %679 = vrot.lane.b32.xlu0 %v271, 112
    %v680 = vpop.permute.xlu0 %679
    %v684 = vsel %vm332, %v647, 0
    %686 = vmatpush.msra.mxu0 0.0
    %687 = vmatpush.msra.mxu0 0.0
    %688 = vmatpush.msra.mxu0 0.0
    %689 = vmatpush.msra.mxu0 0.0
    %690 = vmatpush.msra.mxu0 0.0
    %691 = vmatpush.msra.mxu0 0.0
    %692 = vmatpush.msra.mxu0 0.0
    %693 = vmatpush.msra.mxu0 0.0
    %694 = vmatpush.msra.mxu0 0.0
    %695 = vmatpush.msra.mxu0 0.0
    %696 = vmatpush.msra.mxu0 0.0
    %697 = vmatpush.msra.mxu0 0.0
    %698 = vmatpush.msra.mxu0 0.0
    %699 = vmatpush.msra.mxu0 0.0
    %700 = vmatpush.msra.mxu0 %v680
    %701 = vmatpush.msra.mxu0 %v678
    %702 = vmatmul.f32.gmra.mxu0 %v684
    %v703 = vpop.f32.mrf.mxu0
    %v704 = vadd.f32 0.0, %v703
    %705 = vdwg.mxu0
    %708 = vrot.lane.b32.xlu0 %v675, 16
    %v709 = vpop.permute.xlu0 %708
    %710 = vrot.lane.b32.xlu0 %v704, 16
    %v711 = vpop.permute.xlu0 %710
    %vm714 = vcmask 195712
    %715 = vst.msk [vmem:[#allocation2] sm:$0xff] %vm714, %v709
    %716 = vst.msk [vmem:[#allocation2 + $0x8] sm:$0xff] %vm714, %v711
    %717 = vrot.lane.b32.xlu0 %v178, 104
    %v718 = vpop.permute.xlu0 %717
    %719 = vrot.lane.b32.xlu0 %v217, 104
    %v720 = vpop.permute.xlu0 %719
    %721 = vrot.lane.b32.xlu0 %v220, 104
    %v722 = vpop.permute.xlu0 %721
    %v723 = vsel %vm273, %v718, 0
    %v725 = vsel %vm273, %v720, 0
    %v727 = vsel %vm273, %v722, 0
    %729 = vmatpush.xpose.msra.mxu0 0.0
    %730 = vmatpush.xpose.msra.mxu0 0.0
    %731 = vmatpush.xpose.msra.mxu0 0.0
    %732 = vmatpush.xpose.msra.mxu0 0.0
    %733 = vmatpush.xpose.msra.mxu0 0.0
    %734 = vmatpush.xpose.msra.mxu0 0.0
    %735 = vmatpush.xpose.msra.mxu0 0.0
    %736 = vmatpush.xpose.msra.mxu0 0.0
    %737 = vmatpush.xpose.msra.mxu0 0.0
    %738 = vmatpush.xpose.msra.mxu0 0.0
    %739 = vmatpush.xpose.msra.mxu0 0.0
    %740 = vmatpush.xpose.msra.mxu0 0.0
    %741 = vmatpush.xpose.msra.mxu0 0.0
    %742 = vmatpush.xpose.msra.mxu0 0.0
    %743 = vmatpush.xpose.msra.mxu0 %v727
    %744 = vmatpush.xpose.msra.mxu0 %v725
    %745 = vmatmul.f32.gmra.mxu0 %v723
    %v746 = vpop.f32.mrf.mxu0
    %v747 = vadd.f32 0.0, %v746
    %748 = vdwg.mxu0
    %749 = vrot.lane.b32.xlu0 %v181, 104
    %v750 = vpop.permute.xlu0 %749
    %751 = vrot.lane.b32.xlu0 %v223, 104
    %v752 = vpop.permute.xlu0 %751
    %753 = vrot.lane.b32.xlu0 %v226, 104
    %v754 = vpop.permute.xlu0 %753
    %v755 = vsel %vm273, %v750, 0
    %v757 = vsel %vm273, %v752, 0
    %v759 = vsel %vm273, %v754, 0
    %761 = vmatpush.xpose.msra.mxu0 0.0
    %762 = vmatpush.xpose.msra.mxu0 0.0
    %763 = vmatpush.xpose.msra.mxu0 0.0
    %764 = vmatpush.xpose.msra.mxu0 0.0
    %765 = vmatpush.xpose.msra.mxu0 0.0
    %766 = vmatpush.xpose.msra.mxu0 0.0
    %767 = vmatpush.xpose.msra.mxu0 0.0
    %768 = vmatpush.xpose.msra.mxu0 0.0
    %769 = vmatpush.xpose.msra.mxu0 0.0
    %770 = vmatpush.xpose.msra.mxu0 0.0
    %771 = vmatpush.xpose.msra.mxu0 0.0
    %772 = vmatpush.xpose.msra.mxu0 0.0
    %773 = vmatpush.xpose.msra.mxu0 0.0
    %774 = vmatpush.xpose.msra.mxu0 0.0
    %775 = vmatpush.xpose.msra.mxu0 %v759
    %776 = vmatpush.xpose.msra.mxu0 %v757
    %777 = vmatmul.f32.gmra.mxu0 %v755
    %v778 = vpop.f32.mrf.mxu0
    %v779 = vadd.f32 0.0, %v778
    %780 = vdwg.mxu0
    %v781 = vsel %vm332, %v747, -inf
    %782 = vmax.xlane.f32.xlu0 %v781
    %v783 = vpop.xlane.xlu0 %782
    %v784 = vsel %vm332, %v779, -inf
    %785 = vmax.xlane.f32.xlu0 %v784
    %v786 = vpop.xlane.xlu0 %785
    %v787 = vsub.f32 %v747, %v783
    %v788 = vsub.f32 %v779, %v786
    %v789 = vmul.f32 %v787, 1.442695
    %v790 = vpow.pop %v789
    %v791 = vmul.f32 %v788, 1.442695
    %v792 = vpow.pop %v791
    %v793 = vsel %vm332, %v790, 0.0
    %794 = vadd.xlane.f32.xlu0 %v793
    %v795 = vpop.xlane.xlu0 %794
    %v796 = vsel %vm332, %v792, 0.0
    %797 = vadd.xlane.f32.xlu0 %v796
    %v798 = vpop.xlane.xlu0 %797
    %v799 = vrcp.pop %v795
    %v800 = vrcp.pop %v798
    %v801 = vmul.f32 %v790, %v799
    %v802 = vmul.f32 %v792, %v800
    %803 = vrot.lane.b32.xlu0 %v262, 104
    %v804 = vpop.permute.xlu0 %803
    %805 = vrot.lane.b32.xlu0 %v265, 104
    %v806 = vpop.permute.xlu0 %805
    %v810 = vsel %vm332, %v801, 0
    %812 = vmatpush.msra.mxu0 0.0
    %813 = vmatpush.msra.mxu0 0.0
    %814 = vmatpush.msra.mxu0 0.0
    %815 = vmatpush.msra.mxu0 0.0
    %816 = vmatpush.msra.mxu0 0.0
    %817 = vmatpush.msra.mxu0 0.0
    %818 = vmatpush.msra.mxu0 0.0
    %819 = vmatpush.msra.mxu0 0.0
    %820 = vmatpush.msra.mxu0 0.0
    %821 = vmatpush.msra.mxu0 0.0
    %822 = vmatpush.msra.mxu0 0.0
    %823 = vmatpush.msra.mxu0 0.0
    %824 = vmatpush.msra.mxu0 0.0
    %825 = vmatpush.msra.mxu0 0.0
    %826 = vmatpush.msra.mxu0 %v806
    %827 = vmatpush.msra.mxu0 %v804
    %828 = vmatmul.f32.gmra.mxu0 %v810
    %v829 = vpop.f32.mrf.mxu0
    %v830 = vadd.f32 0.0, %v829
    %831 = vdwg.mxu0
    %832 = vrot.lane.b32.xlu0 %v268, 104
    %v833 = vpop.permute.xlu0 %832
    %834 = vrot.lane.b32.xlu0 %v271, 104
    %v835 = vpop.permute.xlu0 %834
    %v839 = vsel %vm332, %v802, 0
    %841 = vmatpush.msra.mxu0 0.0
    %842 = vmatpush.msra.mxu0 0.0
    %843 = vmatpush.msra.mxu0 0.0
    %844 = vmatpush.msra.mxu0 0.0
    %845 = vmatpush.msra.mxu0 0.0
    %846 = vmatpush.msra.mxu0 0.0
    %847 = vmatpush.msra.mxu0 0.0
    %848 = vmatpush.msra.mxu0 0.0
    %849 = vmatpush.msra.mxu0 0.0
    %850 = vmatpush.msra.mxu0 0.0
    %851 = vmatpush.msra.mxu0 0.0
    %852 = vmatpush.msra.mxu0 0.0
    %853 = vmatpush.msra.mxu0 0.0
    %854 = vmatpush.msra.mxu0 0.0
    %855 = vmatpush.msra.mxu0 %v835
    %856 = vmatpush.msra.mxu0 %v833
    %857 = vmatmul.f32.gmra.mxu0 %v839
    %v858 = vpop.f32.mrf.mxu0
    %v859 = vadd.f32 0.0, %v858
    %860 = vdwg.mxu0
    %863 = vrot.lane.b32.xlu0 %v830, 24
    %v864 = vpop.permute.xlu0 %863
    %865 = vrot.lane.b32.xlu0 %v859, 24
    %v866 = vpop.permute.xlu0 %865
    %vm869 = vcmask 261312
    %870 = vst.msk [vmem:[#allocation2] sm:$0xff] %vm869, %v864
    %871 = vst.msk [vmem:[#allocation2 + $0x8] sm:$0xff] %vm869, %v866
    %v872 = vld [vmem:[#allocation2] sm:$0xff]
    %v873 = vld [vmem:[#allocation2 + $0x8] sm:$0xff]
    %v874 = vld [vmem:[#allocation14] sm:$0xff]
    %v875 = vld [vmem:[#allocation14 + $0x8] sm:$0xff]
    %v876 = vld [vmem:[#allocation14 + $0x10] sm:$0xff]
    %v877 = vld [vmem:[#allocation14 + $0x18] sm:$0xff]
    %v878 = vld [vmem:[%s7] sm:$0x1]
    %v880 = vperm.slane %v878, 0
    %v883 = vsel %vm153, %v872, 0
    %v886 = vsel %vm153, %v873, 0
    %888 = vmatpush.msra.mxu0 0.0
    %889 = vmatpush.msra.mxu0 0.0
    %890 = vmatpush.msra.mxu0 0.0
    %891 = vmatpush.msra.mxu0 0.0
    %892 = vmatpush.msra.mxu0 0.0
    %893 = vmatpush.msra.mxu0 0.0
    %894 = vmatpush.msra.mxu0 0.0
    %895 = vmatpush.msra.mxu0 0.0
    %896 = vmatpush.msra.mxu0 0.0
    %897 = vmatpush.msra.mxu0 0.0
    %898 = vmatpush.msra.mxu0 0.0
    %899 = vmatpush.msra.mxu0 0.0
    %900 = vmatpush.msra.mxu0 %v877
    %901 = vmatpush.msra.mxu0 %v876
    %902 = vmatpush.msra.mxu0 %v875
    %903 = vmatpush.msra.mxu0 %v874
    %904 = vmatmul.f32.gmra.mxu0 %v883
    %v905 = vpop.f32.mrf.mxu0
    %v906 = vadd.f32 %v880, %v905
    %907 = vmatmul.f32.gmra.mxu0 %v886
    %v908 = vpop.f32.mrf.mxu0
    %v909 = vadd.f32 %v880, %v908
    %910 = vdwg.mxu0
    %911 = vst.msk [vmem:[#allocation15] sm:$0xff] %vm153, %v906
    %912 = vst.msk [vmem:[#allocation15 + $0x8] sm:$0xff] %vm153, %v909
    // Predicated region
    $region62: #{tpu_custom_call.1} parent=1 // pred_check
      _
    $region63: #{tpu_custom_call.1} parent=1 // pred_check_branch
      %914 = sbr.rel (0) target = $region65
    $region64: #{tpu_custom_call.1} parent=1 // pred_region
      %916 = vsyncadd [#allocation5], 0
      %s917 = sshll.u32 [#allocation15], 4
      %s918 = int_to_ptr.vmem [resolvable:$true] %s917
      %s919 = sshll.u32 %s8, 4
      %s920 = int_to_ptr.hbm [resolvable:$true] %s919
      %925 = dma.vmem_to_hbm [thread:$0]  %s918, 256, %s920, [#allocation5], 128, 128, 8
    $region65: #{tpu_custom_call.1} parent=1 // pred_fallthru
      _
    // Predicated region
    $region66: #{tpu_custom_call.1} parent=1 // pred_check
      _
    $region67: #{tpu_custom_call.1} parent=1 // pred_check_branch
      %927 = sbr.rel (0) target = $region69
    $region68: #{tpu_custom_call.1} parent=1 // pred_region
      %929 = dma.done [#allocation5], 256
    $region69: #{tpu_custom_call.1} parent=1 // pred_fallthru
      _
    %930 = vsyncpa [#allocation4], 1
    %931 = vsyncpa [#allocation7], 1
    %932 = vsyncpa [#allocation10], 1
    %933 = vsyncpa [#allocation13], 1
    %934 = vsyncpa [#allocation5], 1

// kernel: tpu_custom_call.1
$region0: #{tpu_custom_call.1}
  #allocation0 [shape = 'u32[]', space=smem, size = 0x4, offset = 0x4, fixed_abs, tag = 'smem constant byte address 0x4 - core index']
  #allocation1 [shape = 'u32[72,128]{1,0:T(1,128)}', space=vmem, size = 0x9000, scoped, tag = 'internal scratch']
  #allocation2 [shape = 'f32[16,32]{1,0:T(8,128)}', space=vmem, size = 0x2000, scoped, tag = 'scratch operand']
  %s0 = inlined_call_operand.hbm [shape: f32[2,8,32], index: 0, kind: input, shape index: {}]
  %s1 = inlined_call_operand.hbm [shape: f32[2,16,32], index: 1, kind: input, shape index: {}]
  %s2 = inlined_call_operand.hbm [shape: f32[2,16,32], index: 2, kind: input, shape index: {}]
  %s3 = inlined_call_operand.hbm [shape: f32[32,32], index: 3, kind: input, shape index: {}]
  %s4 = inlined_call_operand.hbm [shape: f32[32,32], index: 4, kind: input, shape index: {}]
  %s5 = inlined_call_operand.hbm [shape: f32[32,32], index: 5, kind: input, shape index: {}]
  %s6 = inlined_call_operand.hbm [shape: f32[32,32], index: 6, kind: input, shape index: {}]
  %s7 = inlined_call_operand.vmem [shape: f32[1,32], index: 7, kind: input, shape index: {}]
  %s8 = inlined_call_operand.hbm [shape: f32[2,8,32], index: 8, kind: output, shape index: {}]
  %s9 = sld [smem:[#allocation0]]
  $region70: #{tpu_custom_call.1} parent=0
    _
  %s11 = ssub.s32 1, %s9
  %s12 = scalar_select 0, %s11, %s9
  $region1: #{tpu_custom_call.1} parent=0
    #allocation3 [shape = 'u8[8192]{0}', space=vmem, size = 0x2000, scoped, tag = 'input window, operand 0, single buffered']
    #allocation4 [shape = 's32[1]{0}', space=sflag, size = 0x4, scoped, tag = 'scoped memory for tpu_custom_call.1']
    #allocation5 [shape = 's32[1]{0}', space=sflag, size = 0x4, scoped, tag = 'scoped memory for tpu_custom_call.1']
    #allocation6 [shape = 'u8[16384]{0}', space=vmem, size = 0x4000, scoped, tag = 'input window, operand 1, single buffered']
    #allocation7 [shape = 's32[1]{0}', space=sflag, size = 0x4, scoped, tag = 'scoped memory for tpu_custom_call.1']
    #allocation8 [shape = 'u8[16384]{0}', space=vmem, size = 0x4000, scoped, tag = 'input window, operand 2, single buffered']
    #allocation9 [shape = 'u8[16384]{0}', space=vmem, size = 0x4000, scoped, tag = 'input window, operand 3, single buffered']
    #allocation10 [shape = 's32[1]{0}', space=sflag, size = 0x4, scoped, tag = 'scoped memory for tpu_custom_call.1']
    #allocation11 [shape = 'u8[16384]{0}', space=vmem, size = 0x4000, scoped, tag = 'input window, operand 4, single buffered']
    #allocation12 [shape = 'u8[16384]{0}', space=vmem, size = 0x4000, scoped, tag = 'input window, operand 5, single buffered']
    #allocation13 [shape = 's32[1]{0}', space=sflag, size = 0x4, scoped, tag = 'scoped memory for tpu_custom_call.1']
    #allocation14 [shape = 'u8[16384]{0}', space=vmem, size = 0x4000, scoped, tag = 'input window, operand 6, single buffered']
    #allocation15 [shape = 'u8[8192]{0}', space=vmem, size = 0x2000, scoped, tag = 'output window, operand 0, single buffered']
    %13 = vsyncpa [#allocation4], 0
    %14 = vsyncpa [#allocation7], 0
    %15 = vsyncpa [#allocation10], 0
    %16 = vsyncpa [#allocation13], 0
    %17 = vsyncpa [#allocation5], 0
    // Predicated region
    $region2: #{tpu_custom_call.1} parent=1 // pred_check
      _
    $region3: #{tpu_custom_call.1} parent=1 // pred_check_branch
      %19 = sbr.rel (0) target = $region5
    $region4: #{tpu_custom_call.1} parent=1 // pred_region
      %21 = vsyncadd [#allocation4], 0
      %s22 = sshll.u32 %s0, 4
      %s23 = int_to_ptr.hbm [resolvable:$true] %s22
      %s24 = sshll.u32 [#allocation3], 4
      %s25 = int_to_ptr.vmem [resolvable:$true] %s24
      %30 = dma.hbm_to_vmem [thread:$0]  %s23, 256, %s25, [#allocation4], 128, 128, 8
    $region5: #{tpu_custom_call.1} parent=1 // pred_fallthru
      _
    // Predicated region
    $region6: #{tpu_custom_call.1} parent=1 // pred_check
      _
    $region7: #{tpu_custom_call.1} parent=1 // pred_check_branch
      %32 = sbr.rel (0) target = $region9
    $region8: #{tpu_custom_call.1} parent=1 // pred_region
      %34 = vsyncadd [#allocation7], 0
      %s35 = sshll.u32 %s1, 4
      %s36 = int_to_ptr.hbm [resolvable:$true] %s35
      %s37 = sshll.u32 [#allocation6], 4
      %s38 = int_to_ptr.vmem [resolvable:$true] %s37
      %43 = dma.hbm_to_vmem [thread:$0]  %s36, 512, %s38, [#allocation7], 128, 128, 8
    $region9: #{tpu_custom_call.1} parent=1 // pred_fallthru
      _
    // Predicated region
    $region10: #{tpu_custom_call.1} parent=1 // pred_check
      _
    $region11: #{tpu_custom_call.1} parent=1 // pred_check_branch
      %45 = sbr.rel (0) target = $region13
    $region12: #{tpu_custom_call.1} parent=1 // pred_region
      %47 = vsyncadd [#allocation7], 0
      %s48 = sshll.u32 %s2, 4
      %s49 = int_to_ptr.hbm [resolvable:$true] %s48
      %s50 = sshll.u32 [#allocation8], 4
      %s51 = int_to_ptr.vmem [resolvable:$true] %s50
      %56 = dma.hbm_to_vmem [thread:$0]  %s49, 512, %s51, [#allocation7], 128, 128, 8
    $region13: #{tpu_custom_call.1} parent=1 // pred_fallthru
      _
    // Predicated region
    $region14: #{tpu_custom_call.1} parent=1 // pred_check
      _
    $region15: #{tpu_custom_call.1} parent=1 // pred_check_branch
      %58 = sbr.rel (0) target = $region17
    $region16: #{tpu_custom_call.1} parent=1 // pred_region
      %60 = vsyncadd [#allocation10], 0
      %s61 = sshll.u32 %s3, 4
      %s62 = int_to_ptr.hbm [resolvable:$true] %s61
      %s63 = sshll.u32 [#allocation9], 4
      %s64 = int_to_ptr.vmem [resolvable:$true] %s63
      %69 = dma.hbm_to_vmem [thread:$0]  %s62, 512, %s64, [#allocation10], 128, 128, 8
    $region17: #{tpu_custom_call.1} parent=1 // pred_fallthru
      _
    // Predicated region
    $region18: #{tpu_custom_call.1} parent=1 // pred_check
      _
    $region19: #{tpu_custom_call.1} parent=1 // pred_check_branch
      %71 = sbr.rel (0) target = $region21
    $region20: #{tpu_custom_call.1} parent=1 // pred_region
      %73 = vsyncadd [#allocation10], 0
      %s74 = sshll.u32 %s4, 4
      %s75 = int_to_ptr.hbm [resolvable:$true] %s74
      %s76 = sshll.u32 [#allocation11], 4
      %s77 = int_to_ptr.vmem [resolvable:$true] %s76
      %82 = dma.hbm_to_vmem [thread:$0]  %s75, 512, %s77, [#allocation10], 128, 128, 8
    $region21: #{tpu_custom_call.1} parent=1 // pred_fallthru
      _
    // Predicated region
    $region22: #{tpu_custom_call.1} parent=1 // pred_check
      _
    $region23: #{tpu_custom_call.1} parent=1 // pred_check_branch
      %84 = sbr.rel (0) target = $region25
    $region24: #{tpu_custom_call.1} parent=1 // pred_region
      %86 = vsyncadd [#allocation13], 0
      %s87 = sshll.u32 %s5, 4
      %s88 = int_to_ptr.hbm [resolvable:$true] %s87
      %s89 = sshll.u32 [#allocation12], 4
      %s90 = int_to_ptr.vmem [resolvable:$true] %s89
      %95 = dma.hbm_to_vmem [thread:$0]  %s88, 512, %s90, [#allocation13], 128, 128, 8
    $region25: #{tpu_custom_call.1} parent=1 // pred_fallthru
      _
    // Predicated region
    $region26: #{tpu_custom_call.1} parent=1 // pred_check
      _
    $region27: #{tpu_custom_call.1} parent=1 // pred_check_branch
      %97 = sbr.rel (0) target = $region29
    $region28: #{tpu_custom_call.1} parent=1 // pred_region
      %99 = vsyncadd [#allocation13], 0
      %s100 = sshll.u32 %s6, 4
      %s101 = int_to_ptr.hbm [resolvable:$true] %s100
      %s102 = sshll.u32 [#allocation14], 4
      %s103 = int_to_ptr.vmem [resolvable:$true] %s102
      %108 = dma.hbm_to_vmem [thread:$0]  %s101, 512, %s103, [#allocation13], 128, 128, 8
    $region29: #{tpu_custom_call.1} parent=1 // pred_fallthru
      _
    // Predicated region
    $region30: #{tpu_custom_call.1} parent=1 // pred_check
      _
    $region31: #{tpu_custom_call.1} parent=1 // pred_check_branch
      %110 = sbr.rel (0) target = $region33
    $region32: #{tpu_custom_call.1} parent=1 // pred_region
      _
    $region33: #{tpu_custom_call.1} parent=1 // pred_fallthru
      _
    // Predicated region
    $region34: #{tpu_custom_call.1} parent=1 // pred_check
      _
    $region35: #{tpu_custom_call.1} parent=1 // pred_check_branch
      %112 = sbr.rel (0) target = $region37
    $region36: #{tpu_custom_call.1} parent=1 // pred_region
      %114 = dma.done [#allocation4], 256
    $region37: #{tpu_custom_call.1} parent=1 // pred_fallthru
      _
    // Predicated region
    $region38: #{tpu_custom_call.1} parent=1 // pred_check
      _
    $region39: #{tpu_custom_call.1} parent=1 // pred_check_branch
      %116 = sbr.rel (0) target = $region41
    $region40: #{tpu_custom_call.1} parent=1 // pred_region
      %118 = dma.done [#allocation7], 512
    $region41: #{tpu_custom_call.1} parent=1 // pred_fallthru
      _
    // Predicated region
    $region42: #{tpu_custom_call.1} parent=1 // pred_check
      _
    $region43: #{tpu_custom_call.1} parent=1 // pred_check_branch
      %120 = sbr.rel (0) target = $region45
    $region44: #{tpu_custom_call.1} parent=1 // pred_region
      %122 = dma.done [#allocation7], 512
    $region45: #{tpu_custom_call.1} parent=1 // pred_fallthru
      _
    // Predicated region
    $region46: #{tpu_custom_call.1} parent=1 // pred_check
      _
    $region47: #{tpu_custom_call.1} parent=1 // pred_check_branch
      %124 = sbr.rel (0) target = $region49
    $region48: #{tpu_custom_call.1} parent=1 // pred_region
      %126 = dma.done [#allocation10], 512
    $region49: #{tpu_custom_call.1} parent=1 // pred_fallthru
      _
    // Predicated region
    $region50: #{tpu_custom_call.1} parent=1 // pred_check
      _
    $region51: #{tpu_custom_call.1} parent=1 // pred_check_branch
      %128 = sbr.rel (0) target = $region53
    $region52: #{tpu_custom_call.1} parent=1 // pred_region
      %130 = dma.done [#allocation10], 512
    $region53: #{tpu_custom_call.1} parent=1 // pred_fallthru
      _
    // Predicated region
    $region54: #{tpu_custom_call.1} parent=1 // pred_check
      _
    $region55: #{tpu_custom_call.1} parent=1 // pred_check_branch
      %132 = sbr.rel (0) target = $region57
    $region56: #{tpu_custom_call.1} parent=1 // pred_region
      %134 = dma.done [#allocation13], 512
    $region57: #{tpu_custom_call.1} parent=1 // pred_fallthru
      _
    // Predicated region
    $region58: #{tpu_custom_call.1} parent=1 // pred_check
      _
    $region59: #{tpu_custom_call.1} parent=1 // pred_check_branch
      %136 = sbr.rel (0) target = $region61
    $region60: #{tpu_custom_call.1} parent=1 // pred_region
      %138 = dma.done [#allocation13], 512
    $region61: #{tpu_custom_call.1} parent=1 // pred_fallthru
      _
    %v139 = vld [vmem:[#allocation3] sm:$0xff]
    %v140 = vld [vmem:[#allocation3 + $0x8] sm:$0xff]
    %v141 = vld [vmem:[#allocation6] sm:$0xff]
    %v142 = vld [vmem:[#allocation6 + $0x8] sm:$0xff]
    %v143 = vld [vmem:[#allocation6 + $0x10] sm:$0xff]
    %v144 = vld [vmem:[#allocation6 + $0x18] sm:$0xff]
    %v145 = vld [vmem:[#allocation8] sm:$0xff]
    %v146 = vld [vmem:[#allocation8 + $0x8] sm:$0xff]
    %v147 = vld [vmem:[#allocation8 + $0x10] sm:$0xff]
    %v148 = vld [vmem:[#allocation8 + $0x18] sm:$0xff]
    %v149 = vld [vmem:[#allocation9] sm:$0xff]
    %v150 = vld [vmem:[#allocation9 + $0x8] sm:$0xff]
    %v151 = vld [vmem:[#allocation9 + $0x10] sm:$0xff]
    %v152 = vld [vmem:[#allocation9 + $0x18] sm:$0xff]
    %vm153 = vcmask 261120
    %v155 = vsel %vm153, %v139, 0
    %v158 = vsel %vm153, %v140, 0
    %160 = vmatpush.msra.mxu0 0.0
    %161 = vmatpush.msra.mxu0 0.0
    %162 = vmatpush.msra.mxu0 0.0
    %163 = vmatpush.msra.mxu0 0.0
    %164 = vmatpush.msra.mxu0 0.0
    %165 = vmatpush.msra.mxu0 0.0
    %166 = vmatpush.msra.mxu0 0.0
    %167 = vmatpush.msra.mxu0 0.0
    %168 = vmatpush.msra.mxu0 0.0
    %169 = vmatpush.msra.mxu0 0.0
    %170 = vmatpush.msra.mxu0 0.0
    %171 = vmatpush.msra.mxu0 0.0
    %172 = vmatpush.msra.mxu0 %v152
    %173 = vmatpush.msra.mxu0 %v151
    %174 = vmatpush.msra.mxu0 %v150
    %175 = vmatpush.msra.mxu0 %v149
    %176 = vmatmul.f32.gmra.mxu0 %v155
    %v177 = vpop.f32.mrf.mxu0
    %v178 = vadd.f32 0.0, %v177
    %179 = vmatmul.f32.gmra.mxu0 %v158
    %v180 = vpop.f32.mrf.mxu0
    %v181 = vadd.f32 0.0, %v180
    %182 = vdwg.mxu0
    %v183 = vld [vmem:[#allocation11] sm:$0xff]
    %v184 = vld [vmem:[#allocation11 + $0x8] sm:$0xff]
    %v185 = vld [vmem:[#allocation11 + $0x10] sm:$0xff]
    %v186 = vld [vmem:[#allocation11 + $0x18] sm:$0xff]
    %v188 = vsel %vm153, %v141, 0
    %v191 = vsel %vm153, %v142, 0
    %v194 = vsel %vm153, %v143, 0
    %v197 = vsel %vm153, %v144, 0
    %199 = vmatpush.msra.mxu0 0.0
    %200 = vmatpush.msra.mxu0 0.0
    %201 = vmatpush.msra.mxu0 0.0
    %202 = vmatpush.msra.mxu0 0.0
    %203 = vmatpush.msra.mxu0 0.0
    %204 = vmatpush.msra.mxu0 0.0
    %205 = vmatpush.msra.mxu0 0.0
    %206 = vmatpush.msra.mxu0 0.0
    %207 = vmatpush.msra.mxu0 0.0
    %208 = vmatpush.msra.mxu0 0.0
    %209 = vmatpush.msra.mxu0 0.0
    %210 = vmatpush.msra.mxu0 0.0
    %211 = vmatpush.msra.mxu0 %v186
    %212 = vmatpush.msra.mxu0 %v185
    %213 = vmatpush.msra.mxu0 %v184
    %214 = vmatpush.msra.mxu0 %v183
    %215 = vmatmul.f32.gmra.mxu0 %v188
    %v216 = vpop.f32.mrf.mxu0
    %v217 = vadd.f32 0.0, %v216
    %218 = vmatmul.f32.gmra.mxu0 %v191
    %v219 = vpop.f32.mrf.mxu0
    %v220 = vadd.f32 0.0, %v219
    %221 = vmatmul.f32.gmra.mxu0 %v194
    %v222 = vpop.f32.mrf.mxu0
    %v223 = vadd.f32 0.0, %v222
    %224 = vmatmul.f32.gmra.mxu0 %v197
    %v225 = vpop.f32.mrf.mxu0
    %v226 = vadd.f32 0.0, %v225
    %227 = vdwg.mxu0
    %v228 = vld [vmem:[#allocation12] sm:$0xff]
    %v229 = vld [vmem:[#allocation12 + $0x8] sm:$0xff]
    %v230 = vld [vmem:[#allocation12 + $0x10] sm:$0xff]
    %v231 = vld [vmem:[#allocation12 + $0x18] sm:$0xff]
    %v233 = vsel %vm153, %v145, 0
    %v236 = vsel %vm153, %v146, 0
    %v239 = vsel %vm153, %v147, 0
    %v242 = vsel %vm153, %v148, 0
    %244 = vmatpush.msra.mxu0 0.0
    %245 = vmatpush.msra.mxu0 0.0
    %246 = vmatpush.msra.mxu0 0.0
    %247 = vmatpush.msra.mxu0 0.0
    %248 = vmatpush.msra.mxu0 0.0
    %249 = vmatpush.msra.mxu0 0.0
    %250 = vmatpush.msra.mxu0 0.0
    %251 = vmatpush.msra.mxu0 0.0
    %252 = vmatpush.msra.mxu0 0.0
    %253 = vmatpush.msra.mxu0 0.0
    %254 = vmatpush.msra.mxu0 0.0
    %255 = vmatpush.msra.mxu0 0.0
    %256 = vmatpush.msra.mxu0 %v231
    %257 = vmatpush.msra.mxu0 %v230
    %258 = vmatpush.msra.mxu0 %v229
    %259 = vmatpush.msra.mxu0 %v228
    %260 = vmatmul.f32.gmra.mxu0 %v233
    %v261 = vpop.f32.mrf.mxu0
    %v262 = vadd.f32 0.0, %v261
    %263 = vmatmul.f32.gmra.mxu0 %v236
    %v264 = vpop.f32.mrf.mxu0
    %v265 = vadd.f32 0.0, %v264
    %266 = vmatmul.f32.gmra.mxu0 %v239
    %v267 = vpop.f32.mrf.mxu0
    %v268 = vadd.f32 0.0, %v267
    %269 = vmatmul.f32.gmra.mxu0 %v242
    %v270 = vpop.f32.mrf.mxu0
    %v271 = vadd.f32 0.0, %v270
    %272 = vdwg.mxu0
    %vm273 = vcmask 64512
    %v275 = vsel %vm273, %v178, 0
    %v278 = vsel %vm273, %v217, 0
    %v281 = vsel %vm273, %v220, 0
    %283 = vmatpush.xpose.msra.mxu0 0.0
    %284 = vmatpush.xpose.msra.mxu0 0.0
    %285 = vmatpush.xpose.msra.mxu0 0.0
    %286 = vmatpush.xpose.msra.mxu0 0.0
    %287 = vmatpush.xpose.msra.mxu0 0.0
    %288 = vmatpush.xpose.msra.mxu0 0.0
    %289 = vmatpush.xpose.msra.mxu0 0.0
    %290 = vmatpush.xpose.msra.mxu0 0.0
    %291 = vmatpush.xpose.msra.mxu0 0.0
    %292 = vmatpush.xpose.msra.mxu0 0.0
    %293 = vmatpush.xpose.msra.mxu0 0.0
    %294 = vmatpush.xpose.msra.mxu0 0.0
    %295 = vmatpush.xpose.msra.mxu0 0.0
    %296 = vmatpush.xpose.msra.mxu0 0.0
    %297 = vmatpush.xpose.msra.mxu0 %v281
    %298 = vmatpush.xpose.msra.mxu0 %v278
    %299 = vmatmul.f32.gmra.mxu0 %v275
    %v300 = vpop.f32.mrf.mxu0
    %v301 = vadd.f32 0.0, %v300
    %302 = vdwg.mxu0
    %v304 = vsel %vm273, %v181, 0
    %v307 = vsel %vm273, %v223, 0
    %v310 = vsel %vm273, %v226, 0
    %312 = vmatpush.xpose.msra.mxu0 0.0
    %313 = vmatpush.xpose.msra.mxu0 0.0
    %314 = vmatpush.xpose.msra.mxu0 0.0
    %315 = vmatpush.xpose.msra.mxu0 0.0
    %316 = vmatpush.xpose.msra.mxu0 0.0
    %317 = vmatpush.xpose.msra.mxu0 0.0
    %318 = vmatpush.xpose.msra.mxu0 0.0
    %319 = vmatpush.xpose.msra.mxu0 0.0
    %320 = vmatpush.xpose.msra.mxu0 0.0
    %321 = vmatpush.xpose.msra.mxu0 0.0
    %322 = vmatpush.xpose.msra.mxu0 0.0
    %323 = vmatpush.xpose.msra.mxu0 0.0
    %324 = vmatpush.xpose.msra.mxu0 0.0
    %325 = vmatpush.xpose.msra.mxu0 0.0
    %326 = vmatpush.xpose.msra.mxu0 %v310
    %327 = vmatpush.xpose.msra.mxu0 %v307
    %328 = vmatmul.f32.gmra.mxu0 %v304
    %v329 = vpop.f32.mrf.mxu0
    %v330 = vadd.f32 0.0, %v329
    %331 = vdwg.mxu0
    %vm332 = vcmask 130048
    %v333 = vsel %vm332, %v301, -inf
    %334 = vmax.xlane.f32.xlu0 %v333
    %v335 = vpop.xlane.xlu0 %334
    %v336 = vsel %vm332, %v330, -inf
    %337 = vmax.xlane.f32.xlu0 %v336
    %v338 = vpop.xlane.xlu0 %337
    %v339 = vsub.f32 %v301, %v335
    %v340 = vsub.f32 %v330, %v338
    %v341 = vmul.f32 %v339, 1.442695
    %v342 = vpow.pop %v341
    %v343 = vmul.f32 %v340, 1.442695
    %v344 = vpow.pop %v343
    %v345 = vsel %vm332, %v342, 0.0
    %346 = vadd.xlane.f32.xlu0 %v345
    %v347 = vpop.xlane.xlu0 %346
    %v348 = vsel %vm332, %v344, 0.0
    %349 = vadd.xlane.f32.xlu0 %v348
    %v350 = vpop.xlane.xlu0 %349
    %v351 = vrcp.pop %v347
    %v352 = vrcp.pop %v350
    %v353 = vmul.f32 %v342, %v351
    %v354 = vmul.f32 %v344, %v352
    %v356 = vsel %vm332, %v353, 0
    %358 = vmatpush.msra.mxu0 0.0
    %359 = vmatpush.msra.mxu0 0.0
    %360 = vmatpush.msra.mxu0 0.0
    %361 = vmatpush.msra.mxu0 0.0
    %362 = vmatpush.msra.mxu0 0.0
    %363 = vmatpush.msra.mxu0 0.0
    %364 = vmatpush.msra.mxu0 0.0
    %365 = vmatpush.msra.mxu0 0.0
    %366 = vmatpush.msra.mxu0 0.0
    %367 = vmatpush.msra.mxu0 0.0
    %368 = vmatpush.msra.mxu0 0.0
    %369 = vmatpush.msra.mxu0 0.0
    %370 = vmatpush.msra.mxu0 0.0
    %371 = vmatpush.msra.mxu0 0.0
    %372 = vmatpush.msra.mxu0 %v265
    %373 = vmatpush.msra.mxu0 %v262
    %374 = vmatmul.f32.gmra.mxu0 %v356
    %v375 = vpop.f32.mrf.mxu0
    %v376 = vadd.f32 0.0, %v375
    %377 = vdwg.mxu0
    %v379 = vsel %vm332, %v354, 0
    %381 = vmatpush.msra.mxu0 0.0
    %382 = vmatpush.msra.mxu0 0.0
    %383 = vmatpush.msra.mxu0 0.0
    %384 = vmatpush.msra.mxu0 0.0
    %385 = vmatpush.msra.mxu0 0.0
    %386 = vmatpush.msra.mxu0 0.0
    %387 = vmatpush.msra.mxu0 0.0
    %388 = vmatpush.msra.mxu0 0.0
    %389 = vmatpush.msra.mxu0 0.0
    %390 = vmatpush.msra.mxu0 0.0
    %391 = vmatpush.msra.mxu0 0.0
    %392 = vmatpush.msra.mxu0 0.0
    %393 = vmatpush.msra.mxu0 0.0
    %394 = vmatpush.msra.mxu0 0.0
    %395 = vmatpush.msra.mxu0 %v271
    %396 = vmatpush.msra.mxu0 %v268
    %397 = vmatmul.f32.gmra.mxu0 %v379
    %v398 = vpop.f32.mrf.mxu0
    %v399 = vadd.f32 0.0, %v398
    %400 = vdwg.mxu0
    %401 = vst.msk [vmem:[#allocation2] sm:$0xff] %vm273, %v376
    %402 = vst.msk [vmem:[#allocation2 + $0x8] sm:$0xff] %vm273, %v399
    %403 = vrot.lane.b32.xlu0 %v178, 120
    %v404 = vpop.permute.xlu0 %403
    %405 = vrot.lane.b32.xlu0 %v217, 120
    %v406 = vpop.permute.xlu0 %405
    %407 = vrot.lane.b32.xlu0 %v220, 120
    %v408 = vpop.permute.xlu0 %407
    %v409 = vsel %vm273, %v404, 0
    %v411 = vsel %vm273, %v406, 0
    %v413 = vsel %vm273, %v408, 0
    %415 = vmatpush.xpose.msra.mxu0 0.0
    %416 = vmatpush.xpose.msra.mxu0 0.0
    %417 = vmatpush.xpose.msra.mxu0 0.0
    %418 = vmatpush.xpose.msra.mxu0 0.0
    %419 = vmatpush.xpose.msra.mxu0 0.0
    %420 = vmatpush.xpose.msra.mxu0 0.0
    %421 = vmatpush.xpose.msra.mxu0 0.0
    %422 = vmatpush.xpose.msra.mxu0 0.0
    %423 = vmatpush.xpose.msra.mxu0 0.0
    %424 = vmatpush.xpose.msra.mxu0 0.0
    %425 = vmatpush.xpose.msra.mxu0 0.0
    %426 = vmatpush.xpose.msra.mxu0 0.0
    %427 = vmatpush.xpose.msra.mxu0 0.0
    %428 = vmatpush.xpose.msra.mxu0 0.0
    %429 = vmatpush.xpose.msra.mxu0 %v413
    %430 = vmatpush.xpose.msra.mxu0 %v411
    %431 = vmatmul.f32.gmra.mxu0 %v409
    %v432 = vpop.f32.mrf.mxu0
    %v433 = vadd.f32 0.0, %v432
    %434 = vdwg.mxu0
    %435 = vrot.lane.b32.xlu0 %v181, 120
    %v436 = vpop.permute.xlu0 %435
    %437 = vrot.lane.b32.xlu0 %v223, 120
    %v438 = vpop.permute.xlu0 %437
    %439 = vrot.lane.b32.xlu0 %v226, 120
    %v440 = vpop.permute.xlu0 %439
    %v441 = vsel %vm273, %v436, 0
    %v443 = vsel %vm273, %v438, 0
    %v445 = vsel %vm273, %v440, 0
    %447 = vmatpush.xpose.msra.mxu0 0.0
    %448 = vmatpush.xpose.msra.mxu0 0.0
    %449 = vmatpush.xpose.msra.mxu0 0.0
    %450 = vmatpush.xpose.msra.mxu0 0.0
    %451 = vmatpush.xpose.msra.mxu0 0.0
    %452 = vmatpush.xpose.msra.mxu0 0.0
    %453 = vmatpush.xpose.msra.mxu0 0.0
    %454 = vmatpush.xpose.msra.mxu0 0.0
    %455 = vmatpush.xpose.msra.mxu0 0.0
    %456 = vmatpush.xpose.msra.mxu0 0.0
    %457 = vmatpush.xpose.msra.mxu0 0.0
    %458 = vmatpush.xpose.msra.mxu0 0.0
    %459 = vmatpush.xpose.msra.mxu0 0.0
    %460 = vmatpush.xpose.msra.mxu0 0.0
    %461 = vmatpush.xpose.msra.mxu0 %v445
    %462 = vmatpush.xpose.msra.mxu0 %v443
    %463 = vmatmul.f32.gmra.mxu0 %v441
    %v464 = vpop.f32.mrf.mxu0
    %v465 = vadd.f32 0.0, %v464
    %466 = vdwg.mxu0
    %v467 = vsel %vm332, %v433, -inf
    %468 = vmax.xlane.f32.xlu0 %v467
    %v469 = vpop.xlane.xlu0 %468
    %v470 = vsel %vm332, %v465, -inf
    %471 = vmax.xlane.f32.xlu0 %v470
    %v472 = vpop.xlane.xlu0 %471
    %v473 = vsub.f32 %v433, %v469
    %v474 = vsub.f32 %v465, %v472
    %v475 = vmul.f32 %v473, 1.442695
    %v476 = vpow.pop %v475
    %v477 = vmul.f32 %v474, 1.442695
    %v478 = vpow.pop %v477
    %v479 = vsel %vm332, %v476, 0.0
    %480 = vadd.xlane.f32.xlu0 %v479
    %v481 = vpop.xlane.xlu0 %480
    %v482 = vsel %vm332, %v478, 0.0
    %483 = vadd.xlane.f32.xlu0 %v482
    %v484 = vpop.xlane.xlu0 %483
    %v485 = vrcp.pop %v481
    %v486 = vrcp.pop %v484
    %v487 = vmul.f32 %v476, %v485
    %v488 = vmul.f32 %v478, %v486
    %491 = vrot.lane.b32.xlu0 %v262, 120
    %v492 = vpop.permute.xlu0 %491
    %493 = vrot.lane.b32.xlu0 %v265, 120
    %v494 = vpop.permute.xlu0 %493
    %v498 = vsel %vm332, %v487, 0
    %500 = vmatpush.msra.mxu0 0.0
    %501 = vmatpush.msra.mxu0 0.0
    %502 = vmatpush.msra.mxu0 0.0
    %503 = vmatpush.msra.mxu0 0.0
    %504 = vmatpush.msra.mxu0 0.0
    %505 = vmatpush.msra.mxu0 0.0
    %506 = vmatpush.msra.mxu0 0.0
    %507 = vmatpush.msra.mxu0 0.0
    %508 = vmatpush.msra.mxu0 0.0
    %509 = vmatpush.msra.mxu0 0.0
    %510 = vmatpush.msra.mxu0 0.0
    %511 = vmatpush.msra.mxu0 0.0
    %512 = vmatpush.msra.mxu0 0.0
    %513 = vmatpush.msra.mxu0 0.0
    %514 = vmatpush.msra.mxu0 %v494
    %515 = vmatpush.msra.mxu0 %v492
    %516 = vmatmul.f32.gmra.mxu0 %v498
    %v517 = vpop.f32.mrf.mxu0
    %v518 = vadd.f32 0.0, %v517
    %519 = vdwg.mxu0
    %522 = vrot.lane.b32.xlu0 %v268, 120
    %v523 = vpop.permute.xlu0 %522
    %524 = vrot.lane.b32.xlu0 %v271, 120
    %v525 = vpop.permute.xlu0 %524
    %v529 = vsel %vm332, %v488, 0
    %531 = vmatpush.msra.mxu0 0.0
    %532 = vmatpush.msra.mxu0 0.0
    %533 = vmatpush.msra.mxu0 0.0
    %534 = vmatpush.msra.mxu0 0.0
    %535 = vmatpush.msra.mxu0 0.0
    %536 = vmatpush.msra.mxu0 0.0
    %537 = vmatpush.msra.mxu0 0.0
    %538 = vmatpush.msra.mxu0 0.0
    %539 = vmatpush.msra.mxu0 0.0
    %540 = vmatpush.msra.mxu0 0.0
    %541 = vmatpush.msra.mxu0 0.0
    %542 = vmatpush.msra.mxu0 0.0
    %543 = vmatpush.msra.mxu0 0.0
    %544 = vmatpush.msra.mxu0 0.0
    %545 = vmatpush.msra.mxu0 %v525
    %546 = vmatpush.msra.mxu0 %v523
    %547 = vmatmul.f32.gmra.mxu0 %v529
    %v548 = vpop.f32.mrf.mxu0
    %v549 = vadd.f32 0.0, %v548
    %550 = vdwg.mxu0
    %553 = vrot.lane.b32.xlu0 %v518, 8
    %v554 = vpop.permute.xlu0 %553
    %555 = vrot.lane.b32.xlu0 %v549, 8
    %v556 = vpop.permute.xlu0 %555
    %vm559 = vcmask 130112
    %560 = vst.msk [vmem:[#allocation2] sm:$0xff] %vm559, %v554
    %561 = vst.msk [vmem:[#allocation2 + $0x8] sm:$0xff] %vm559, %v556
    %562 = vrot.lane.b32.xlu0 %v178, 112
    %v563 = vpop.permute.xlu0 %562
    %564 = vrot.lane.b32.xlu0 %v217, 112
    %v565 = vpop.permute.xlu0 %564
    %566 = vrot.lane.b32.xlu0 %v220, 112
    %v567 = vpop.permute.xlu0 %566
    %v568 = vsel %vm273, %v563, 0
    %v570 = vsel %vm273, %v565, 0
    %v572 = vsel %vm273, %v567, 0
    %574 = vmatpush.xpose.msra.mxu0 0.0
    %575 = vmatpush.xpose.msra.mxu0 0.0
    %576 = vmatpush.xpose.msra.mxu0 0.0
    %577 = vmatpush.xpose.msra.mxu0 0.0
    %578 = vmatpush.xpose.msra.mxu0 0.0
    %579 = vmatpush.xpose.msra.mxu0 0.0
    %580 = vmatpush.xpose.msra.mxu0 0.0
    %581 = vmatpush.xpose.msra.mxu0 0.0
    %582 = vmatpush.xpose.msra.mxu0 0.0
    %583 = vmatpush.xpose.msra.mxu0 0.0
    %584 = vmatpush.xpose.msra.mxu0 0.0
    %585 = vmatpush.xpose.msra.mxu0 0.0
    %586 = vmatpush.xpose.msra.mxu0 0.0
    %587 = vmatpush.xpose.msra.mxu0 0.0
    %588 = vmatpush.xpose.msra.mxu0 %v572
    %589 = vmatpush.xpose.msra.mxu0 %v570
    %590 = vmatmul.f32.gmra.mxu0 %v568
    %v591 = vpop.f32.mrf.mxu0
    %v592 = vadd.f32 0.0, %v591
    %593 = vdwg.mxu0
    %594 = vrot.lane.b32.xlu0 %v181, 112
    %v595 = vpop.permute.xlu0 %594
    %596 = vrot.lane.b32.xlu0 %v223, 112
    %v597 = vpop.permute.xlu0 %596
    %598 = vrot.lane.b32.xlu0 %v226, 112
    %v599 = vpop.permute.xlu0 %598
    %v600 = vsel %vm273, %v595, 0
    %v602 = vsel %vm273, %v597, 0
    %v604 = vsel %vm273, %v599, 0
    %606 = vmatpush.xpose.msra.mxu0 0.0
    %607 = vmatpush.xpose.msra.mxu0 0.0
    %608 = vmatpush.xpose.msra.mxu0 0.0
    %609 = vmatpush.xpose.msra.mxu0 0.0
    %610 = vmatpush.xpose.msra.mxu0 0.0
    %611 = vmatpush.xpose.msra.mxu0 0.0
    %612 = vmatpush.xpose.msra.mxu0 0.0
    %613 = vmatpush.xpose.msra.mxu0 0.0
    %614 = vmatpush.xpose.msra.mxu0 0.0
    %615 = vmatpush.xpose.msra.mxu0 0.0
    %616 = vmatpush.xpose.msra.mxu0 0.0
    %617 = vmatpush.xpose.msra.mxu0 0.0
    %618 = vmatpush.xpose.msra.mxu0 0.0
    %619 = vmatpush.xpose.msra.mxu0 0.0
    %620 = vmatpush.xpose.msra.mxu0 %v604
    %621 = vmatpush.xpose.msra.mxu0 %v602
    %622 = vmatmul.f32.gmra.mxu0 %v600
    %v623 = vpop.f32.mrf.mxu0
    %v624 = vadd.f32 0.0, %v623
    %625 = vdwg.mxu0
    %v626 = vsel %vm332, %v592, -inf
    %627 = vmax.xlane.f32.xlu0 %v626
    %v628 = vpop.xlane.xlu0 %627
    %v629 = vsel %vm332, %v624, -inf
    %630 = vmax.xlane.f32.xlu0 %v629
    %v631 = vpop.xlane.xlu0 %630
    %v632 = vsub.f32 %v592, %v628
    %v633 = vsub.f32 %v624, %v631
    %v634 = vmul.f32 %v632, 1.442695
    %v635 = vpow.pop %v634
    %v636 = vmul.f32 %v633, 1.442695
    %v637 = vpow.pop %v636
    %v638 = vsel %vm332, %v635, 0.0
    %639 = vadd.xlane.f32.xlu0 %v638
    %v640 = vpop.xlane.xlu0 %639
    %v641 = vsel %vm332, %v637, 0.0
    %642 = vadd.xlane.f32.xlu0 %v641
    %v643 = vpop.xlane.xlu0 %642
    %v644 = vrcp.pop %v640
    %v645 = vrcp.pop %v643
    %v646 = vmul.f32 %v635, %v644
    %v647 = vmul.f32 %v637, %v645
    %648 = vrot.lane.b32.xlu0 %v262, 112
    %v649 = vpop.permute.xlu0 %648
    %650 = vrot.lane.b32.xlu0 %v265, 112
    %v651 = vpop.permute.xlu0 %650
    %v655 = vsel %vm332, %v646, 0
    %657 = vmatpush.msra.mxu0 0.0
    %658 = vmatpush.msra.mxu0 0.0
    %659 = vmatpush.msra.mxu0 0.0
    %660 = vmatpush.msra.mxu0 0.0
    %661 = vmatpush.msra.mxu0 0.0
    %662 = vmatpush.msra.mxu0 0.0
    %663 = vmatpush.msra.mxu0 0.0
    %664 = vmatpush.msra.mxu0 0.0
    %665 = vmatpush.msra.mxu0 0.0
    %666 = vmatpush.msra.mxu0 0.0
    %667 = vmatpush.msra.mxu0 0.0
    %668 = vmatpush.msra.mxu0 0.0
    %669 = vmatpush.msra.mxu0 0.0
    %670 = vmatpush.msra.mxu0 0.0
    %671 = vmatpush.msra.mxu0 %v651
    %672 = vmatpush.msra.mxu0 %v649
    %673 = vmatmul.f32.gmra.mxu0 %v655
    %v674 = vpop.f32.mrf.mxu0
    %v675 = vadd.f32 0.0, %v674
    %676 = vdwg.mxu0
    %677 = vrot.lane.b32.xlu0 %v268, 112
    %v678 = vpop.permute.xlu0 %677
    %679 = vrot.lane.b32.xlu0 %v271, 112
    %v680 = vpop.permute.xlu0 %679
    %v684 = vsel %vm332, %v647, 0
    %686 = vmatpush.msra.mxu0 0.0
    %687 = vmatpush.msra.mxu0 0.0
    %688 = vmatpush.msra.mxu0 0.0
    %689 = vmatpush.msra.mxu0 0.0
    %690 = vmatpush.msra.mxu0 0.0
    %691 = vmatpush.msra.mxu0 0.0
    %692 = vmatpush.msra.mxu0 0.0
    %693 = vmatpush.msra.mxu0 0.0
    %694 = vmatpush.msra.mxu0 0.0
    %695 = vmatpush.msra.mxu0 0.0
    %696 = vmatpush.msra.mxu0 0.0
    %697 = vmatpush.msra.mxu0 0.0
    %698 = vmatpush.msra.mxu0 0.0
    %699 = vmatpush.msra.mxu0 0.0
    %700 = vmatpush.msra.mxu0 %v680
    %701 = vmatpush.msra.mxu0 %v678
    %702 = vmatmul.f32.gmra.mxu0 %v684
    %v703 = vpop.f32.mrf.mxu0
    %v704 = vadd.f32 0.0, %v703
    %705 = vdwg.mxu0
    %708 = vrot.lane.b32.xlu0 %v675, 16
    %v709 = vpop.permute.xlu0 %708
    %710 = vrot.lane.b32.xlu0 %v704, 16
    %v711 = vpop.permute.xlu0 %710
    %vm714 = vcmask 195712
    %715 = vst.msk [vmem:[#allocation2] sm:$0xff] %vm714, %v709
    %716 = vst.msk [vmem:[#allocation2 + $0x8] sm:$0xff] %vm714, %v711
    %717 = vrot.lane.b32.xlu0 %v178, 104
    %v718 = vpop.permute.xlu0 %717
    %719 = vrot.lane.b32.xlu0 %v217, 104
    %v720 = vpop.permute.xlu0 %719
    %721 = vrot.lane.b32.xlu0 %v220, 104
    %v722 = vpop.permute.xlu0 %721
    %v723 = vsel %vm273, %v718, 0
    %v725 = vsel %vm273, %v720, 0
    %v727 = vsel %vm273, %v722, 0
    %729 = vmatpush.xpose.msra.mxu0 0.0
    %730 = vmatpush.xpose.msra.mxu0 0.0
    %731 = vmatpush.xpose.msra.mxu0 0.0
    %732 = vmatpush.xpose.msra.mxu0 0.0
    %733 = vmatpush.xpose.msra.mxu0 0.0
    %734 = vmatpush.xpose.msra.mxu0 0.0
    %735 = vmatpush.xpose.msra.mxu0 0.0
    %736 = vmatpush.xpose.msra.mxu0 0.0
    %737 = vmatpush.xpose.msra.mxu0 0.0
    %738 = vmatpush.xpose.msra.mxu0 0.0
    %739 = vmatpush.xpose.msra.mxu0 0.0
    %740 = vmatpush.xpose.msra.mxu0 0.0
    %741 = vmatpush.xpose.msra.mxu0 0.0
    %742 = vmatpush.xpose.msra.mxu0 0.0
    %743 = vmatpush.xpose.msra.mxu0 %v727
    %744 = vmatpush.xpose.msra.mxu0 %v725
    %745 = vmatmul.f32.gmra.mxu0 %v723
    %v746 = vpop.f32.mrf.mxu0
    %v747 = vadd.f32 0.0, %v746
    %748 = vdwg.mxu0
    %749 = vrot.lane.b32.xlu0 %v181, 104
    %v750 = vpop.permute.xlu0 %749
    %751 = vrot.lane.b32.xlu0 %v223, 104
    %v752 = vpop.permute.xlu0 %751
    %753 = vrot.lane.b32.xlu0 %v226, 104
    %v754 = vpop.permute.xlu0 %753
    %v755 = vsel %vm273, %v750, 0
    %v757 = vsel %vm273, %v752, 0
    %v759 = vsel %vm273, %v754, 0
    %761 = vmatpush.xpose.msra.mxu0 0.0
    %762 = vmatpush.xpose.msra.mxu0 0.0
    %763 = vmatpush.xpose.msra.mxu0 0.0
    %764 = vmatpush.xpose.msra.mxu0 0.0
    %765 = vmatpush.xpose.msra.mxu0 0.0
    %766 = vmatpush.xpose.msra.mxu0 0.0
    %767 = vmatpush.xpose.msra.mxu0 0.0
    %768 = vmatpush.xpose.msra.mxu0 0.0
    %769 = vmatpush.xpose.msra.mxu0 0.0
    %770 = vmatpush.xpose.msra.mxu0 0.0
    %771 = vmatpush.xpose.msra.mxu0 0.0
    %772 = vmatpush.xpose.msra.mxu0 0.0
    %773 = vmatpush.xpose.msra.mxu0 0.0
    %774 = vmatpush.xpose.msra.mxu0 0.0
    %775 = vmatpush.xpose.msra.mxu0 %v759
    %776 = vmatpush.xpose.msra.mxu0 %v757
    %777 = vmatmul.f32.gmra.mxu0 %v755
    %v778 = vpop.f32.mrf.mxu0
    %v779 = vadd.f32 0.0, %v778
    %780 = vdwg.mxu0
    %v781 = vsel %vm332, %v747, -inf
    %782 = vmax.xlane.f32.xlu0 %v781
    %v783 = vpop.xlane.xlu0 %782
    %v784 = vsel %vm332, %v779, -inf
    %785 = vmax.xlane.f32.xlu0 %v784
    %v786 = vpop.xlane.xlu0 %785
    %v787 = vsub.f32 %v747, %v783
    %v788 = vsub.f32 %v779, %v786
    %v789 = vmul.f32 %v787, 1.442695
    %v790 = vpow.pop %v789
    %v791 = vmul.f32 %v788, 1.442695
    %v792 = vpow.pop %v791
    %v793 = vsel %vm332, %v790, 0.0
    %794 = vadd.xlane.f32.xlu0 %v793
    %v795 = vpop.xlane.xlu0 %794
    %v796 = vsel %vm332, %v792, 0.0
    %797 = vadd.xlane.f32.xlu0 %v796
    %v798 = vpop.xlane.xlu0 %797
    %v799 = vrcp.pop %v795
    %v800 = vrcp.pop %v798
    %v801 = vmul.f32 %v790, %v799
    %v802 = vmul.f32 %v792, %v800
    %803 = vrot.lane.b32.xlu0 %v262, 104
    %v804 = vpop.permute.xlu0 %803
    %805 = vrot.lane.b32.xlu0 %v265, 104
    %v806 = vpop.permute.xlu0 %805
    %v810 = vsel %vm332, %v801, 0
    %812 = vmatpush.msra.mxu0 0.0
    %813 = vmatpush.msra.mxu0 0.0
    %814 = vmatpush.msra.mxu0 0.0
    %815 = vmatpush.msra.mxu0 0.0
    %816 = vmatpush.msra.mxu0 0.0
    %817 = vmatpush.msra.mxu0 0.0
    %818 = vmatpush.msra.mxu0 0.0
    %819 = vmatpush.msra.mxu0 0.0
    %820 = vmatpush.msra.mxu0 0.0
    %821 = vmatpush.msra.mxu0 0.0
    %822 = vmatpush.msra.mxu0 0.0
    %823 = vmatpush.msra.mxu0 0.0
    %824 = vmatpush.msra.mxu0 0.0
    %825 = vmatpush.msra.mxu0 0.0
    %826 = vmatpush.msra.mxu0 %v806
    %827 = vmatpush.msra.mxu0 %v804
    %828 = vmatmul.f32.gmra.mxu0 %v810
    %v829 = vpop.f32.mrf.mxu0
    %v830 = vadd.f32 0.0, %v829
    %831 = vdwg.mxu0
    %832 = vrot.lane.b32.xlu0 %v268, 104
    %v833 = vpop.permute.xlu0 %832
    %834 = vrot.lane.b32.xlu0 %v271, 104
    %v835 = vpop.permute.xlu0 %834
    %v839 = vsel %vm332, %v802, 0
    %841 = vmatpush.msra.mxu0 0.0
    %842 = vmatpush.msra.mxu0 0.0
    %843 = vmatpush.msra.mxu0 0.0
    %844 = vmatpush.msra.mxu0 0.0
    %845 = vmatpush.msra.mxu0 0.0
    %846 = vmatpush.msra.mxu0 0.0
    %847 = vmatpush.msra.mxu0 0.0
    %848 = vmatpush.msra.mxu0 0.0
    %849 = vmatpush.msra.mxu0 0.0
    %850 = vmatpush.msra.mxu0 0.0
    %851 = vmatpush.msra.mxu0 0.0
    %852 = vmatpush.msra.mxu0 0.0
    %853 = vmatpush.msra.mxu0 0.0
    %854 = vmatpush.msra.mxu0 0.0
    %855 = vmatpush.msra.mxu0 %v835
    %856 = vmatpush.msra.mxu0 %v833
    %857 = vmatmul.f32.gmra.mxu0 %v839
    %v858 = vpop.f32.mrf.mxu0
    %v859 = vadd.f32 0.0, %v858
    %860 = vdwg.mxu0
    %863 = vrot.lane.b32.xlu0 %v830, 24
    %v864 = vpop.permute.xlu0 %863
    %865 = vrot.lane.b32.xlu0 %v859, 24
    %v866 = vpop.permute.xlu0 %865
    %vm869 = vcmask 261312
    %870 = vst.msk [vmem:[#allocation2] sm:$0xff] %vm869, %v864
    %871 = vst.msk [vmem:[#allocation2 + $0x8] sm:$0xff] %vm869, %v866
    %v872 = vld [vmem:[#allocation2] sm:$0xff]
    %v873 = vld [vmem:[#allocation2 + $0x8] sm:$0xff]
    %v874 = vld [vmem:[#allocation14] sm:$0xff]
    %v875 = vld [vmem:[#allocation14 + $0x8] sm:$0xff]
    %v876 = vld [vmem:[#allocation14 + $0x10] sm:$0xff]
    %v877 = vld [vmem:[#allocation14 + $0x18] sm:$0xff]
    %v878 = vld [vmem:[%s7] sm:$0x1]
    %v880 = vperm.slane %v878, 0
    %v883 = vsel %vm153, %v872, 0
    %v886 = vsel %vm153, %v873, 0
    %888 = vmatpush.msra.mxu0 0.0
    %889 = vmatpush.msra.mxu0 0.0
    %890 = vmatpush.msra.mxu0 0.0
    %891 = vmatpush.msra.mxu0 0.0
    %892 = vmatpush.msra.mxu0 0.0
    %893 = vmatpush.msra.mxu0 0.0
    %894 = vmatpush.msra.mxu0 0.0
    %895 = vmatpush.msra.mxu0 0.0
    %896 = vmatpush.msra.mxu0 0.0
    %897 = vmatpush.msra.mxu0 0.0
    %898 = vmatpush.msra.mxu0 0.0
    %899 = vmatpush.msra.mxu0 0.0
    %900 = vmatpush.msra.mxu0 %v877
    %901 = vmatpush.msra.mxu0 %v876
    %902 = vmatpush.msra.mxu0 %v875
    %903 = vmatpush.msra.mxu0 %v874
    %904 = vmatmul.f32.gmra.mxu0 %v883
    %v905 = vpop.f32.mrf.mxu0
    %v906 = vadd.f32 %v880, %v905
    %907 = vmatmul.f32.gmra.mxu0 %v886
    %v908 = vpop.f32.mrf.mxu0
    %v909 = vadd.f32 %v880, %v908
    %910 = vdwg.mxu0
    %911 = vst.msk [vmem:[#allocation15] sm:$0xff] %vm153, %v906
    %912 = vst.msk [vmem:[#allocation15 + $0x8] sm:$0xff] %vm153, %v909
    // Predicated region
    $region62: #{tpu_custom_call.1} parent=1 // pred_check
      _
    $region63: #{tpu_custom_call.1} parent=1 // pred_check_branch
      %914 = sbr.rel (0) target = $region65
    $region64: #{tpu_custom_call.1} parent=1 // pred_region
      %916 = vsyncadd [#allocation5], 0
      %s917 = sshll.u32 [#allocation15], 4
      %s918 = int_to_ptr.vmem [resolvable:$true] %s917
      %s919 = sshll.u32 %s8, 4
      %s920 = int_to_ptr.hbm [resolvable:$true] %s919
      %925 = dma.vmem_to_hbm [thread:$0]  %s918, 256, %s920, [#allocation5], 128, 128, 8
    $region65: #{tpu_custom_call.1} parent=1 // pred_fallthru
      _
    // Predicated region
    $region66: #{tpu_custom_call.1} parent=1 // pred_check
      _
    $region67: #{tpu_custom_call.1} parent=1 // pred_check_branch
      %927 = sbr.rel (0) target = $region69
    $region68: #{tpu_custom_call.1} parent=1 // pred_region
      %929 = dma.done [#allocation5], 256
    $region69: #{tpu_custom_call.1} parent=1 // pred_fallthru
      _
    %930 = vsyncpa [#allocation4], 1
    %931 = vsyncpa [#allocation7], 1
    %932 = vsyncpa [#allocation10], 1
    %933 = vsyncpa [#allocation13], 1
    %934 = vsyncpa [#allocation5], 1

</llo_original>
